<compile_context>
chip_gen: v7x
topology: tpu7x:2x2x1
jax: 0.10.0
libtpu: 0.0.40
codegen_flags: <defaults>
</compile_context>

<pallas_src>
import functools

import jax
import jax.numpy as jnp
from jax import lax
from jax.experimental import pallas as pl
from jax.experimental.pallas import tpu as pltpu


# ---------------------------------------------------------------------------
# Kernel
# ---------------------------------------------------------------------------
def lstm_layer_kernel(xp_ref, whh_ref, out_ref, h_scr, c_scr, *,
                      hidden_pad, apply_relu):
    """Recurrent part of one LSTM layer over one T-chunk.

    xp_ref:  (Tt, B_pad, 4*H_pad)  precomputed x_t @ W_ih^T + (b_ih+b_hh),
                                   gate blocks packed as [i, f, o, g]
    whh_ref: (H_pad, 4*H_pad)      W_hh^T (packed/padded the same way)
    out_ref: (Tt, B_pad, H_pad)    h_t output (ReLU fused on last layer)
    h_scr, c_scr: (B_pad, H_pad)   hidden / cell state, persist across grid steps
    """
    Hp = hidden_pad
    Tt = xp_ref.shape[0]

    @pl.when(pl.program_id(0) == 0)
    def _init():
        # h0 = c0 = 0 (matches torch.zeros init in the module's forward).
        h_scr[...] = jnp.zeros_like(h_scr)
        c_scr[...] = jnp.zeros_like(c_scr)

    def step(t, carry):
        # Only the recurrent matmul lives on the serial critical path.
        gates = xp_ref[t] + jnp.dot(h_scr[...], whh_ref[...],
                                    preferred_element_type=jnp.float32)
        # Packed gate order is [i, f, o, g]: one sigmoid, one tanh.
        sig = jax.nn.sigmoid(gates[:, :3 * Hp])
        i_g = sig[:, 0 * Hp:1 * Hp]
        f_g = sig[:, 1 * Hp:2 * Hp]
        o_g = sig[:, 2 * Hp:3 * Hp]
        g_g = jnp.tanh(gates[:, 3 * Hp:4 * Hp])

        c_new = f_g * c_scr[...] + i_g * g_g
        h_new = o_g * jnp.tanh(c_new)

        c_scr[...] = c_new
        h_scr[...] = h_new

        if apply_relu:
            out_ref[t] = jnp.maximum(h_new, 0.0)
        else:
            out_ref[t] = h_new
        return carry

    lax.fori_loop(0, Tt, step, 0, unroll=True)


# ---------------------------------------------------------------------------
# Wrapper
# ---------------------------------------------------------------------------
def _round_up(n, m):
    return (n + m - 1) // m * m


def _pick_t_chunk(T, B_pad, G_pad, max_chunk_bytes=2 << 20):
    """Largest divisor of T whose x-projection chunk fits the budget."""
    best = 1
    for c in range(1, T + 1):
        if T % c == 0 and c * B_pad * G_pad * 4 <= max_chunk_bytes:
            best = c
    return best


def _pack_gate_cols(w_t, H, H_pad):
    """w_t: (X, 4H) with gate blocks [i,f,g,o] along columns (PyTorch order).

    Returns (X, 4*H_pad): blocks reordered to [i,f,o,g], each zero-padded to H_pad.
    """
    i_b = w_t[:, 0 * H:1 * H]
    f_b = w_t[:, 1 * H:2 * H]
    g_b = w_t[:, 2 * H:3 * H]
    o_b = w_t[:, 3 * H:4 * H]
    pad = ((0, 0), (0, H_pad - H))
    return jnp.concatenate(
        [jnp.pad(i_b, pad), jnp.pad(f_b, pad), jnp.pad(o_b, pad), jnp.pad(g_b, pad)],
        axis=1)


def _prepare_layer(w_ih, w_hh, b_ih, b_hh, H_pad):
    """PyTorch-layout weights -> packed/padded matmul operands."""
    H = w_hh.shape[1]
    wih_t = _pack_gate_cols(jnp.transpose(w_ih), H, H_pad)        # (Din, 4*H_pad)
    whh_t = _pack_gate_cols(jnp.transpose(w_hh), H, H_pad)        # (H,   4*H_pad)
    whh_t = jnp.pad(whh_t, ((0, H_pad - H), (0, 0)))              # (H_pad, 4*H_pad)
    bias = _pack_gate_cols((b_ih + b_hh).reshape(1, -1), H, H_pad)  # (1, 4*H_pad)
    return wih_t, whh_t, bias


def lstm_layer(xp, whh_t, *, t_chunk, hidden_pad, apply_relu):
    """xp: (T, B_pad, 4*H_pad) hoisted input projection (bias folded in)."""
    T, B_pad, G_pad = xp.shape
    H_pad = hidden_pad

    kernel = functools.partial(
        lstm_layer_kernel, hidden_pad=H_pad, apply_relu=apply_relu)

    # VMEM budget: double-buffered in/out chunks + weights + h/c scratch.
    est_bytes = 4 * (2 * t_chunk * B_pad * G_pad      # xp chunk (2 bufs)
                     + 2 * H_pad * G_pad              # W_hh^T
                     + 2 * t_chunk * B_pad * H_pad    # out chunk (2 bufs)
                     + 2 * B_pad * H_pad)             # h/c scratch
    vmem_limit = min(max(int(est_bytes * 1.5), 8 << 20), 32 << 20)

    return pl.pallas_call(
        kernel,
        out_shape=jax.ShapeDtypeStruct((T, B_pad, H_pad), jnp.float32),
        grid_spec=pltpu.PrefetchScalarGridSpec(
            num_scalar_prefetch=0,
            grid=(T // t_chunk,),
            in_specs=[
                pl.BlockSpec((t_chunk, B_pad, G_pad), lambda t: (t, 0, 0)),
                pl.BlockSpec((H_pad, G_pad), lambda t: (0, 0)),
            ],
            out_specs=pl.BlockSpec((t_chunk, B_pad, H_pad), lambda t: (t, 0, 0)),
            scratch_shapes=[
                pltpu.VMEM((B_pad, H_pad), jnp.float32),  # h_t
                pltpu.VMEM((B_pad, H_pad), jnp.float32),  # c_t
            ],
        ),
        compiler_params=pltpu.CompilerParams(
            dimension_semantics=("arbitrary",),   # sequential recurrence over T
            vmem_limit_bytes=vmem_limit,
        ),
    )(xp, whh_t)


def basenet_clstm_forward(x, params):
    """x: (B, T, input_size). params: list of per-layer (w_ih, w_hh, b_ih, b_hh)."""
    B, T, _ = x.shape
    H = params[0][1].shape[1]
    num_layers = len(params)

    B_pad = _round_up(max(B, 8), 8)        # sublane-dense batch
    H_pad = _round_up(max(H, 128), 128)    # lane-dense hidden
    G_pad = 4 * H_pad
    t_chunk = _pick_t_chunk(T, B_pad, G_pad)

    x_p = jnp.pad(x, ((0, B_pad - B), (0, 0), (0, 0)))   # (B_pad, T, Din)

    h_seq = None
    for layer_idx, (w_ih, w_hh, b_ih, b_hh) in enumerate(params):
        wih_t, whh_t, bias = _prepare_layer(w_ih, w_hh, b_ih, b_hh, H_pad)
        if layer_idx == 0:
            # One big matmul for all timesteps, emitted time-major directly.
            xp = jnp.einsum('btd,dg->tbg', x_p, wih_t) + bias
        else:
            wih_t = jnp.pad(wih_t, ((0, H_pad - wih_t.shape[0]), (0, 0)))
            xp = jnp.einsum('tbh,hg->tbg', h_seq, wih_t) + bias
        is_last = layer_idx == num_layers - 1
        # Final ReLU is elementwise, so fusing it into the last layer's kernel
        # is equivalent to relu(out.reshape(B, -1)).
        h_seq = lstm_layer(xp, whh_t, t_chunk=t_chunk, hidden_pad=H_pad,
                           apply_relu=is_last)

    out = h_seq[:, :B, :H]                 # drop padding -> (T, B, H)
    out = jnp.transpose(out, (1, 0, 2))    # (B, T, H)
    return out.reshape(B, -1)              # (B, T*H)


# ---------------------------------------------------------------------------
# Pure-JAX reference (PyTorch eval-mode semantics) and param init
# ---------------------------------------------------------------------------
def lstm_reference(x, params):
    B, T, _ = x.shape
    H = params[0][1].shape[1]
    h_seq = x
    for (w_ih, w_hh, b_ih, b_hh) in params:
        h = jnp.zeros((B, H), jnp.float32)
        c = jnp.zeros((B, H), jnp.float32)
        outs = []
        for t in range(T):
            g = h_seq[:, t, :] @ w_ih.T + h @ w_hh.T + b_ih + b_hh
            i = jax.nn.sigmoid(g[:, 0 * H:1 * H])
            f = jax.nn.sigmoid(g[:, 1 * H:2 * H])
            gg = jnp.tanh(g[:, 2 * H:3 * H])
            o = jax.nn.sigmoid(g[:, 3 * H:4 * H])
            c = f * c + i * gg
            h = o * jnp.tanh(c)
            outs.append(h)
        h_seq = jnp.stack(outs, axis=1)    # (B, T, H)
    return jnp.maximum(h_seq.reshape(B, -1), 0.0)


def init_lstm_params(key, input_size, hidden_size, num_layers):
    """Deterministic init matching PyTorch LSTM shapes: U(-1/sqrt(H), 1/sqrt(H))."""
    params = []
    bound = 1.0 / jnp.sqrt(jnp.float32(hidden_size))
    for layer in range(num_layers):
        d_in = input_size if layer == 0 else hidden_size
        key, k1, k2, k3, k4 = jax.random.split(key, 5)
        w_ih = jax.random.uniform(k1, (4 * hidden_size, d_in),
                                  jnp.float32, -bound, bound)
        w_hh = jax.random.uniform(k2, (4 * hidden_size, hidden_size),
                                  jnp.float32, -bound, bound)
        b_ih = jax.random.uniform(k3, (4 * hidden_size,),
                                  jnp.float32, -bound, bound)
        b_hh = jax.random.uniform(k4, (4 * hidden_size,),
                                  jnp.float32, -bound, bound)
        params.append((w_ih, w_hh, b_ih, b_hh))
    return params


if __name__ == "__main__":
    # Small shapes consistent with the module's forward.
    batch = 2
    seq_len = 8
    input_size = 16
    hidden_size = 32
    num_layers = 2
    # num_classes is unused in the module's forward pass.

    key = jax.random.PRNGKey(0)
    key, kx = jax.random.split(key)
    x = jax.random.normal(kx, (batch, seq_len, input_size), jnp.float32)
    params = init_lstm_params(key, input_size, hidden_size, num_layers)

    out = jax.block_until_ready(basenet_clstm_forward(x, params))
    ref = jax.block_until_ready(lstm_reference(x, params))

    assert out.shape == (batch, seq_len * hidden_size), out.shape
    assert bool(jnp.all(out >= 0.0))                     # ReLU output is non-negative
    assert bool(jnp.allclose(out, ref, rtol=2e-3, atol=2e-3)), \
        float(jnp.max(jnp.abs(out - ref)))
    print("KERNEL_OK")
</pallas_src>

<mosaic_0001>
module attributes {stable_mosaic.version = 11 : i64} {
  func.func @lstm_layer_kernel(%arg0: i32, %arg1: memref<8x8x512xf32, #tpu.memory_space<vmem>>, %arg2: memref<128x512xf32, #tpu.memory_space<vmem>>, %arg3: memref<8x8x128xf32, #tpu.memory_space<vmem>>, %arg4: memref<8x128xf32, #tpu.memory_space<vmem>>, %arg5: memref<8x128xf32, #tpu.memory_space<vmem>>) attributes {dimension_semantics = [#tpu.dimension_semantics<arbitrary>], iteration_bounds = array<i64: 1>, scalar_prefetch = 0 : i64, scratch_operands = 2 : i64, tpu.core_type = #tpu.core_type<tc>, window_params = [{transform_indices = @transform_0, window_bounds = array<i64: 8, 8, 512>}, {pipeline_mode = #tpu.pipeline_mode<synchronous>, transform_indices = @transform_1, window_bounds = array<i64: 128, 512>}, {transform_indices = @transform_2, window_bounds = array<i64: 8, 8, 128>}]} {
    %c0_i32 = arith.constant 0 : i32
    %0 = arith.cmpi eq, %arg0, %c0_i32 : i32
    %1 = arith.extui %0 : i1 to i32
    %c0_i32_0 = arith.constant 0 : i32
    %2 = arith.cmpi ne, %1, %c0_i32_0 : i32
    scf.if %2 {
      %cst_128 = arith.constant 0.000000e+00 : f32
      %243 = vector.broadcast %cst_128 : f32 to vector<8x128xf32>
      %c0_129 = arith.constant 0 : index
      %c0_130 = arith.constant 0 : index
      %244 = vector.load %arg4[%c0_129, %c0_130] : memref<8x128xf32, #tpu.memory_space<vmem>>, vector<8x128xf32>
      tpu.vector_store %arg4[%c0_129, %c0_130], %243 {strides = array<i32>} : memref<8x128xf32, #tpu.memory_space<vmem>>, vector<8x128xf32>,
      %cst_131 = arith.constant 0.000000e+00 : f32
      %245 = vector.broadcast %cst_131 : f32 to vector<8x128xf32>
      %c0_132 = arith.constant 0 : index
      %c0_133 = arith.constant 0 : index
      %246 = vector.load %arg5[%c0_132, %c0_133] : memref<8x128xf32, #tpu.memory_space<vmem>>, vector<8x128xf32>
      tpu.vector_store %arg5[%c0_132, %c0_133], %245 {strides = array<i32>} : memref<8x128xf32, #tpu.memory_space<vmem>>, vector<8x128xf32>,
    } else {
    }
    %c0_i32_1 = arith.constant 0 : i32
    %3 = arith.index_cast %c0_i32_1 : i32 to index
    %c0 = arith.constant 0 : index
    %c0_2 = arith.constant 0 : index
    %4 = vector.load %arg1[%3, %c0, %c0_2] : memref<8x8x512xf32, #tpu.memory_space<vmem>>, vector<1x8x512xf32>
    %5 = vector.shape_cast %4 : vector<1x8x512xf32> to vector<8x512xf32>
    %c0_3 = arith.constant 0 : index
    %c0_4 = arith.constant 0 : index
    %6 = vector.load %arg4[%c0_3, %c0_4] : memref<8x128xf32, #tpu.memory_space<vmem>>, vector<8x128xf32>
    %c0_5 = arith.constant 0 : index
    %c0_6 = arith.constant 0 : index
    %7 = vector.load %arg2[%c0_5, %c0_6] : memref<128x512xf32, #tpu.memory_space<vmem>>, vector<128x512xf32>
    %cst = arith.constant dense<0.000000e+00> : vector<8x512xf32>
    %8 = tpu.matmul %6, %7, %cst {dimension_numbers = #tpu.dot_dimension_numbers<[1], [0], [0], [1], [0, 0, 1, 1], [], []>} : vector<8x128xf32>, vector<128x512xf32>, vector<8x512xf32> -> vector<8x512xf32>
    %9 = arith.addf %5, %8 : vector<8x512xf32>
    %10 = vector.extract_strided_slice %9 {offsets = [0, 0], sizes = [8, 384], strides = [1, 1]} : vector<8x512xf32> to vector<8x384xf32>
    %11 = arith.negf %10 : vector<8x384xf32>
    %12 = math.exp %11 : vector<8x384xf32>
    %cst_7 = arith.constant 1.000000e+00 : f32
    %13 = vector.broadcast %cst_7 : f32 to vector<8x384xf32>
    %14 = arith.addf %13, %12 : vector<8x384xf32>
    %15 = arith.divf %13, %14 : vector<8x384xf32>
    %16 = vector.extract_strided_slice %15 {offsets = [0, 0], sizes = [8, 128], strides = [1, 1]} : vector<8x384xf32> to vector<8x128xf32>
    %17 = vector.extract_strided_slice %15 {offsets = [0, 128], sizes = [8, 128], strides = [1, 1]} : vector<8x384xf32> to vector<8x128xf32>
    %18 = vector.extract_strided_slice %15 {offsets = [0, 256], sizes = [8, 128], strides = [1, 1]} : vector<8x384xf32> to vector<8x128xf32>
    %19 = vector.extract_strided_slice %9 {offsets = [0, 384], sizes = [8, 128], strides = [1, 1]} : vector<8x512xf32> to vector<8x128xf32>
    %20 = math.tanh %19 : vector<8x128xf32>
    %c0_8 = arith.constant 0 : index
    %c0_9 = arith.constant 0 : index
    %21 = vector.load %arg5[%c0_8, %c0_9] : memref<8x128xf32, #tpu.memory_space<vmem>>, vector<8x128xf32>
    %22 = arith.mulf %17, %21 : vector<8x128xf32>
    %23 = arith.mulf %16, %20 : vector<8x128xf32>
    %24 = arith.addf %22, %23 : vector<8x128xf32>
    %25 = math.tanh %24 : vector<8x128xf32>
    %26 = arith.mulf %18, %25 : vector<8x128xf32>
    %c0_10 = arith.constant 0 : index
    %c0_11 = arith.constant 0 : index
    %27 = vector.load %arg5[%c0_10, %c0_11] : memref<8x128xf32, #tpu.memory_space<vmem>>, vector<8x128xf32>
    tpu.vector_store %arg5[%c0_10, %c0_11], %24 {strides = array<i32>} : memref<8x128xf32, #tpu.memory_space<vmem>>, vector<8x128xf32>,
    %c0_12 = arith.constant 0 : index
    %c0_13 = arith.constant 0 : index
    %28 = vector.load %arg4[%c0_12, %c0_13] : memref<8x128xf32, #tpu.memory_space<vmem>>, vector<8x128xf32>
    tpu.vector_store %arg4[%c0_12, %c0_13], %26 {strides = array<i32>} : memref<8x128xf32, #tpu.memory_space<vmem>>, vector<8x128xf32>,
    %29 = arith.index_cast %c0_i32_1 : i32 to index
    %c0_14 = arith.constant 0 : index
    %c0_15 = arith.constant 0 : index
    %30 = vector.load %arg3[%29, %c0_14, %c0_15] : memref<8x8x128xf32, #tpu.memory_space<vmem>>, vector<1x8x128xf32>
    %31 = vector.shape_cast %30 : vector<1x8x128xf32> to vector<8x128xf32>
    %32 = vector.shape_cast %26 : vector<8x128xf32> to vector<1x8x128xf32>
    tpu.vector_store %arg3[%29, %c0_14, %c0_15], %32 {strides = array<i32>} : memref<8x8x128xf32, #tpu.memory_space<vmem>>, vector<1x8x128xf32>,
    %c1_i32 = arith.constant 1 : i32
    %33 = arith.index_cast %c1_i32 : i32 to index
    %c0_16 = arith.constant 0 : index
    %c0_17 = arith.constant 0 : index
    %34 = vector.load %arg1[%33, %c0_16, %c0_17] : memref<8x8x512xf32, #tpu.memory_space<vmem>>, vector<1x8x512xf32>
    %35 = vector.shape_cast %34 : vector<1x8x512xf32> to vector<8x512xf32>
    %c0_18 = arith.constant 0 : index
    %c0_19 = arith.constant 0 : index
    %36 = vector.load %arg4[%c0_18, %c0_19] : memref<8x128xf32, #tpu.memory_space<vmem>>, vector<8x128xf32>
    %c0_20 = arith.constant 0 : index
    %c0_21 = arith.constant 0 : index
    %37 = vector.load %arg2[%c0_20, %c0_21] : memref<128x512xf32, #tpu.memory_space<vmem>>, vector<128x512xf32>
    %cst_22 = arith.constant dense<0.000000e+00> : vector<8x512xf32>
    %38 = tpu.matmul %36, %37, %cst_22 {dimension_numbers = #tpu.dot_dimension_numbers<[1], [0], [0], [1], [0, 0, 1, 1], [], []>} : vector<8x128xf32>, vector<128x512xf32>, vector<8x512xf32> -> vector<8x512xf32>
    %39 = arith.addf %35, %38 : vector<8x512xf32>
    %40 = vector.extract_strided_slice %39 {offsets = [0, 0], sizes = [8, 384], strides = [1, 1]} : vector<8x512xf32> to vector<8x384xf32>
    %41 = arith.negf %40 : vector<8x384xf32>
    %42 = math.exp %41 : vector<8x384xf32>
    %cst_23 = arith.constant 1.000000e+00 : f32
    %43 = vector.broadcast %cst_23 : f32 to vector<8x384xf32>
    %44 = arith.addf %43, %42 : vector<8x384xf32>
    %45 = arith.divf %43, %44 : vector<8x384xf32>
    %46 = vector.extract_strided_slice %45 {offsets = [0, 0], sizes = [8, 128], strides = [1, 1]} : vector<8x384xf32> to vector<8x128xf32>
    %47 = vector.extract_strided_slice %45 {offsets = [0, 128], sizes = [8, 128], strides = [1, 1]} : vector<8x384xf32> to vector<8x128xf32>
    %48 = vector.extract_strided_slice %45 {offsets = [0, 256], sizes = [8, 128], strides = [1, 1]} : vector<8x384xf32> to vector<8x128xf32>
    %49 = vector.extract_strided_slice %39 {offsets = [0, 384], sizes = [8, 128], strides = [1, 1]} : vector<8x512xf32> to vector<8x128xf32>
    %50 = math.tanh %49 : vector<8x128xf32>
    %c0_24 = arith.constant 0 : index
    %c0_25 = arith.constant 0 : index
    %51 = vector.load %arg5[%c0_24, %c0_25] : memref<8x128xf32, #tpu.memory_space<vmem>>, vector<8x128xf32>
    %52 = arith.mulf %47, %51 : vector<8x128xf32>
    %53 = arith.mulf %46, %50 : vector<8x128xf32>
    %54 = arith.addf %52, %53 : vector<8x128xf32>
    %55 = math.tanh %54 : vector<8x128xf32>
    %56 = arith.mulf %48, %55 : vector<8x128xf32>
    %c0_26 = arith.constant 0 : index
    %c0_27 = arith.constant 0 : index
    %57 = vector.load %arg5[%c0_26, %c0_27] : memref<8x128xf32, #tpu.memory_space<vmem>>, vector<8x128xf32>
    tpu.vector_store %arg5[%c0_26, %c0_27], %54 {strides = array<i32>} : memref<8x128xf32, #tpu.memory_space<vmem>>, vector<8x128xf32>,
    %c0_28 = arith.constant 0 : index
    %c0_29 = arith.constant 0 : index
    %58 = vector.load %arg4[%c0_28, %c0_29] : memref<8x128xf32, #tpu.memory_space<vmem>>, vector<8x128xf32>
    tpu.vector_store %arg4[%c0_28, %c0_29], %56 {strides = array<i32>} : memref<8x128xf32, #tpu.memory_space<vmem>>, vector<8x128xf32>,
    %59 = arith.index_cast %c1_i32 : i32 to index
    %c0_30 = arith.constant 0 : index
    %c0_31 = arith.constant 0 : index
    %60 = vector.load %arg3[%59, %c0_30, %c0_31] : memref<8x8x128xf32, #tpu.memory_space<vmem>>, vector<1x8x128xf32>
    %61 = vector.shape_cast %60 : vector<1x8x128xf32> to vector<8x128xf32>
    %62 = vector.shape_cast %56 : vector<8x128xf32> to vector<1x8x128xf32>
    tpu.vector_store %arg3[%59, %c0_30, %c0_31], %62 {strides = array<i32>} : memref<8x8x128xf32, #tpu.memory_space<vmem>>, vector<1x8x128xf32>,
    %c2_i32 = arith.constant 2 : i32
    %63 = arith.index_cast %c2_i32 : i32 to index
    %c0_32 = arith.constant 0 : index
    %c0_33 = arith.constant 0 : index
    %64 = vector.load %arg1[%63, %c0_32, %c0_33] : memref<8x8x512xf32, #tpu.memory_space<vmem>>, vector<1x8x512xf32>
    %65 = vector.shape_cast %64 : vector<1x8x512xf32> to vector<8x512xf32>
    %c0_34 = arith.constant 0 : index
    %c0_35 = arith.constant 0 : index
    %66 = vector.load %arg4[%c0_34, %c0_35] : memref<8x128xf32, #tpu.memory_space<vmem>>, vector<8x128xf32>
    %c0_36 = arith.constant 0 : index
    %c0_37 = arith.constant 0 : index
    %67 = vector.load %arg2[%c0_36, %c0_37] : memref<128x512xf32, #tpu.memory_space<vmem>>, vector<128x512xf32>
    %cst_38 = arith.constant dense<0.000000e+00> : vector<8x512xf32>
    %68 = tpu.matmul %66, %67, %cst_38 {dimension_numbers = #tpu.dot_dimension_numbers<[1], [0], [0], [1], [0, 0, 1, 1], [], []>} : vector<8x128xf32>, vector<128x512xf32>, vector<8x512xf32> -> vector<8x512xf32>
    %69 = arith.addf %65, %68 : vector<8x512xf32>
    %70 = vector.extract_strided_slice %69 {offsets = [0, 0], sizes = [8, 384], strides = [1, 1]} : vector<8x512xf32> to vector<8x384xf32>
    %71 = arith.negf %70 : vector<8x384xf32>
    %72 = math.exp %71 : vector<8x384xf32>
    %cst_39 = arith.constant 1.000000e+00 : f32
    %73 = vector.broadcast %cst_39 : f32 to vector<8x384xf32>
    %74 = arith.addf %73, %72 : vector<8x384xf32>
    %75 = arith.divf %73, %74 : vector<8x384xf32>
    %76 = vector.extract_strided_slice %75 {offsets = [0, 0], sizes = [8, 128], strides = [1, 1]} : vector<8x384xf32> to vector<8x128xf32>
    %77 = vector.extract_strided_slice %75 {offsets = [0, 128], sizes = [8, 128], strides = [1, 1]} : vector<8x384xf32> to vector<8x128xf32>
    %78 = vector.extract_strided_slice %75 {offsets = [0, 256], sizes = [8, 128], strides = [1, 1]} : vector<8x384xf32> to vector<8x128xf32>
    %79 = vector.extract_strided_slice %69 {offsets = [0, 384], sizes = [8, 128], strides = [1, 1]} : vector<8x512xf32> to vector<8x128xf32>
    %80 = math.tanh %79 : vector<8x128xf32>
    %c0_40 = arith.constant 0 : index
    %c0_41 = arith.constant 0 : index
    %81 = vector.load %arg5[%c0_40, %c0_41] : memref<8x128xf32, #tpu.memory_space<vmem>>, vector<8x128xf32>
    %82 = arith.mulf %77, %81 : vector<8x128xf32>
    %83 = arith.mulf %76, %80 : vector<8x128xf32>
    %84 = arith.addf %82, %83 : vector<8x128xf32>
    %85 = math.tanh %84 : vector<8x128xf32>
    %86 = arith.mulf %78, %85 : vector<8x128xf32>
    %c0_42 = arith.constant 0 : index
    %c0_43 = arith.constant 0 : index
    %87 = vector.load %arg5[%c0_42, %c0_43] : memref<8x128xf32, #tpu.memory_space<vmem>>, vector<8x128xf32>
    tpu.vector_store %arg5[%c0_42, %c0_43], %84 {strides = array<i32>} : memref<8x128xf32, #tpu.memory_space<vmem>>, vector<8x128xf32>,
    %c0_44 = arith.constant 0 : index
    %c0_45 = arith.constant 0 : index
    %88 = vector.load %arg4[%c0_44, %c0_45] : memref<8x128xf32, #tpu.memory_space<vmem>>, vector<8x128xf32>
    tpu.vector_store %arg4[%c0_44, %c0_45], %86 {strides = array<i32>} : memref<8x128xf32, #tpu.memory_space<vmem>>, vector<8x128xf32>,
    %89 = arith.index_cast %c2_i32 : i32 to index
    %c0_46 = arith.constant 0 : index
    %c0_47 = arith.constant 0 : index
    %90 = vector.load %arg3[%89, %c0_46, %c0_47] : memref<8x8x128xf32, #tpu.memory_space<vmem>>, vector<1x8x128xf32>
    %91 = vector.shape_cast %90 : vector<1x8x128xf32> to vector<8x128xf32>
    %92 = vector.shape_cast %86 : vector<8x128xf32> to vector<1x8x128xf32>
    tpu.vector_store %arg3[%89, %c0_46, %c0_47], %92 {strides = array<i32>} : memref<8x8x128xf32, #tpu.memory_space<vmem>>, vector<1x8x128xf32>,
    %c3_i32 = arith.constant 3 : i32
    %93 = arith.index_cast %c3_i32 : i32 to index
    %c0_48 = arith.constant 0 : index
    %c0_49 = arith.constant 0 : index
    %94 = vector.load %arg1[%93, %c0_48, %c0_49] : memref<8x8x512xf32, #tpu.memory_space<vmem>>, vector<1x8x512xf32>
    %95 = vector.shape_cast %94 : vector<1x8x512xf32> to vector<8x512xf32>
    %c0_50 = arith.constant 0 : index
    %c0_51 = arith.constant 0 : index
    %96 = vector.load %arg4[%c0_50, %c0_51] : memref<8x128xf32, #tpu.memory_space<vmem>>, vector<8x128xf32>
    %c0_52 = arith.constant 0 : index
    %c0_53 = arith.constant 0 : index
    %97 = vector.load %arg2[%c0_52, %c0_53] : memref<128x512xf32, #tpu.memory_space<vmem>>, vector<128x512xf32>
    %cst_54 = arith.constant dense<0.000000e+00> : vector<8x512xf32>
    %98 = tpu.matmul %96, %97, %cst_54 {dimension_numbers = #tpu.dot_dimension_numbers<[1], [0], [0], [1], [0, 0, 1, 1], [], []>} : vector<8x128xf32>, vector<128x512xf32>, vector<8x512xf32> -> vector<8x512xf32>
    %99 = arith.addf %95, %98 : vector<8x512xf32>
    %100 = vector.extract_strided_slice %99 {offsets = [0, 0], sizes = [8, 384], strides = [1, 1]} : vector<8x512xf32> to vector<8x384xf32>
    %101 = arith.negf %100 : vector<8x384xf32>
    %102 = math.exp %101 : vector<8x384xf32>
    %cst_55 = arith.constant 1.000000e+00 : f32
    %103 = vector.broadcast %cst_55 : f32 to vector<8x384xf32>
    %104 = arith.addf %103, %102 : vector<8x384xf32>
    %105 = arith.divf %103, %104 : vector<8x384xf32>
    %106 = vector.extract_strided_slice %105 {offsets = [0, 0], sizes = [8, 128], strides = [1, 1]} : vector<8x384xf32> to vector<8x128xf32>
    %107 = vector.extract_strided_slice %105 {offsets = [0, 128], sizes = [8, 128], strides = [1, 1]} : vector<8x384xf32> to vector<8x128xf32>
    %108 = vector.extract_strided_slice %105 {offsets = [0, 256], sizes = [8, 128], strides = [1, 1]} : vector<8x384xf32> to vector<8x128xf32>
    %109 = vector.extract_strided_slice %99 {offsets = [0, 384], sizes = [8, 128], strides = [1, 1]} : vector<8x512xf32> to vector<8x128xf32>
    %110 = math.tanh %109 : vector<8x128xf32>
    %c0_56 = arith.constant 0 : index
    %c0_57 = arith.constant 0 : index
    %111 = vector.load %arg5[%c0_56, %c0_57] : memref<8x128xf32, #tpu.memory_space<vmem>>, vector<8x128xf32>
    %112 = arith.mulf %107, %111 : vector<8x128xf32>
    %113 = arith.mulf %106, %110 : vector<8x128xf32>
    %114 = arith.addf %112, %113 : vector<8x128xf32>
    %115 = math.tanh %114 : vector<8x128xf32>
    %116 = arith.mulf %108, %115 : vector<8x128xf32>
    %c0_58 = arith.constant 0 : index
    %c0_59 = arith.constant 0 : index
    %117 = vector.load %arg5[%c0_58, %c0_59] : memref<8x128xf32, #tpu.memory_space<vmem>>, vector<8x128xf32>
    tpu.vector_store %arg5[%c0_58, %c0_59], %114 {strides = array<i32>} : memref<8x128xf32, #tpu.memory_space<vmem>>, vector<8x128xf32>,
    %c0_60 = arith.constant 0 : index
    %c0_61 = arith.constant 0 : index
    %118 = vector.load %arg4[%c0_60, %c0_61] : memref<8x128xf32, #tpu.memory_space<vmem>>, vector<8x128xf32>
    tpu.vector_store %arg4[%c0_60, %c0_61], %116 {strides = array<i32>} : memref<8x128xf32, #tpu.memory_space<vmem>>, vector<8x128xf32>,
    %119 = arith.index_cast %c3_i32 : i32 to index
    %c0_62 = arith.constant 0 : index
    %c0_63 = arith.constant 0 : index
    %120 = vector.load %arg3[%119, %c0_62, %c0_63] : memref<8x8x128xf32, #tpu.memory_space<vmem>>, vector<1x8x128xf32>
    %121 = vector.shape_cast %120 : vector<1x8x128xf32> to vector<8x128xf32>
    %122 = vector.shape_cast %116 : vector<8x128xf32> to vector<1x8x128xf32>
    tpu.vector_store %arg3[%119, %c0_62, %c0_63], %122 {strides = array<i32>} : memref<8x8x128xf32, #tpu.memory_space<vmem>>, vector<1x8x128xf32>,
    %c4_i32 = arith.constant 4 : i32
    %123 = arith.index_cast %c4_i32 : i32 to index
    %c0_64 = arith.constant 0 : index
    %c0_65 = arith.constant 0 : index
    %124 = vector.load %arg1[%123, %c0_64, %c0_65] : memref<8x8x512xf32, #tpu.memory_space<vmem>>, vector<1x8x512xf32>
    %125 = vector.shape_cast %124 : vector<1x8x512xf32> to vector<8x512xf32>
    %c0_66 = arith.constant 0 : index
    %c0_67 = arith.constant 0 : index
    %126 = vector.load %arg4[%c0_66, %c0_67] : memref<8x128xf32, #tpu.memory_space<vmem>>, vector<8x128xf32>
    %c0_68 = arith.constant 0 : index
    %c0_69 = arith.constant 0 : index
    %127 = vector.load %arg2[%c0_68, %c0_69] : memref<128x512xf32, #tpu.memory_space<vmem>>, vector<128x512xf32>
    %cst_70 = arith.constant dense<0.000000e+00> : vector<8x512xf32>
    %128 = tpu.matmul %126, %127, %cst_70 {dimension_numbers = #tpu.dot_dimension_numbers<[1], [0], [0], [1], [0, 0, 1, 1], [], []>} : vector<8x128xf32>, vector<128x512xf32>, vector<8x512xf32> -> vector<8x512xf32>
    %129 = arith.addf %125, %128 : vector<8x512xf32>
    %130 = vector.extract_strided_slice %129 {offsets = [0, 0], sizes = [8, 384], strides = [1, 1]} : vector<8x512xf32> to vector<8x384xf32>
    %131 = arith.negf %130 : vector<8x384xf32>
    %132 = math.exp %131 : vector<8x384xf32>
    %cst_71 = arith.constant 1.000000e+00 : f32
    %133 = vector.broadcast %cst_71 : f32 to vector<8x384xf32>
    %134 = arith.addf %133, %132 : vector<8x384xf32>
    %135 = arith.divf %133, %134 : vector<8x384xf32>
    %136 = vector.extract_strided_slice %135 {offsets = [0, 0], sizes = [8, 128], strides = [1, 1]} : vector<8x384xf32> to vector<8x128xf32>
    %137 = vector.extract_strided_slice %135 {offsets = [0, 128], sizes = [8, 128], strides = [1, 1]} : vector<8x384xf32> to vector<8x128xf32>
    %138 = vector.extract_strided_slice %135 {offsets = [0, 256], sizes = [8, 128], strides = [1, 1]} : vector<8x384xf32> to vector<8x128xf32>
    %139 = vector.extract_strided_slice %129 {offsets = [0, 384], sizes = [8, 128], strides = [1, 1]} : vector<8x512xf32> to vector<8x128xf32>
    %140 = math.tanh %139 : vector<8x128xf32>
    %c0_72 = arith.constant 0 : index
    %c0_73 = arith.constant 0 : index
    %141 = vector.load %arg5[%c0_72, %c0_73] : memref<8x128xf32, #tpu.memory_space<vmem>>, vector<8x128xf32>
    %142 = arith.mulf %137, %141 : vector<8x128xf32>
    %143 = arith.mulf %136, %140 : vector<8x128xf32>
    %144 = arith.addf %142, %143 : vector<8x128xf32>
    %145 = math.tanh %144 : vector<8x128xf32>
    %146 = arith.mulf %138, %145 : vector<8x128xf32>
    %c0_74 = arith.constant 0 : index
    %c0_75 = arith.constant 0 : index
    %147 = vector.load %arg5[%c0_74, %c0_75] : memref<8x128xf32, #tpu.memory_space<vmem>>, vector<8x128xf32>
    tpu.vector_store %arg5[%c0_74, %c0_75], %144 {strides = array<i32>} : memref<8x128xf32, #tpu.memory_space<vmem>>, vector<8x128xf32>,
    %c0_76 = arith.constant 0 : index
    %c0_77 = arith.constant 0 : index
    %148 = vector.load %arg4[%c0_76, %c0_77] : memref<8x128xf32, #tpu.memory_space<vmem>>, vector<8x128xf32>
    tpu.vector_store %arg4[%c0_76, %c0_77], %146 {strides = array<i32>} : memref<8x128xf32, #tpu.memory_space<vmem>>, vector<8x128xf32>,
    %149 = arith.index_cast %c4_i32 : i32 to index
    %c0_78 = arith.constant 0 : index
    %c0_79 = arith.constant 0 : index
    %150 = vector.load %arg3[%149, %c0_78, %c0_79] : memref<8x8x128xf32, #tpu.memory_space<vmem>>, vector<1x8x128xf32>
    %151 = vector.shape_cast %150 : vector<1x8x128xf32> to vector<8x128xf32>
    %152 = vector.shape_cast %146 : vector<8x128xf32> to vector<1x8x128xf32>
    tpu.vector_store %arg3[%149, %c0_78, %c0_79], %152 {strides = array<i32>} : memref<8x8x128xf32, #tpu.memory_space<vmem>>, vector<1x8x128xf32>,
    %c5_i32 = arith.constant 5 : i32
    %153 = arith.index_cast %c5_i32 : i32 to index
    %c0_80 = arith.constant 0 : index
    %c0_81 = arith.constant 0 : index
    %154 = vector.load %arg1[%153, %c0_80, %c0_81] : memref<8x8x512xf32, #tpu.memory_space<vmem>>, vector<1x8x512xf32>
    %155 = vector.shape_cast %154 : vector<1x8x512xf32> to vector<8x512xf32>
    %c0_82 = arith.constant 0 : index
    %c0_83 = arith.constant 0 : index
    %156 = vector.load %arg4[%c0_82, %c0_83] : memref<8x128xf32, #tpu.memory_space<vmem>>, vector<8x128xf32>
    %c0_84 = arith.constant 0 : index
    %c0_85 = arith.constant 0 : index
    %157 = vector.load %arg2[%c0_84, %c0_85] : memref<128x512xf32, #tpu.memory_space<vmem>>, vector<128x512xf32>
    %cst_86 = arith.constant dense<0.000000e+00> : vector<8x512xf32>
    %158 = tpu.matmul %156, %157, %cst_86 {dimension_numbers = #tpu.dot_dimension_numbers<[1], [0], [0], [1], [0, 0, 1, 1], [], []>} : vector<8x128xf32>, vector<128x512xf32>, vector<8x512xf32> -> vector<8x512xf32>
    %159 = arith.addf %155, %158 : vector<8x512xf32>
    %160 = vector.extract_strided_slice %159 {offsets = [0, 0], sizes = [8, 384], strides = [1, 1]} : vector<8x512xf32> to vector<8x384xf32>
    %161 = arith.negf %160 : vector<8x384xf32>
    %162 = math.exp %161 : vector<8x384xf32>
    %cst_87 = arith.constant 1.000000e+00 : f32
    %163 = vector.broadcast %cst_87 : f32 to vector<8x384xf32>
    %164 = arith.addf %163, %162 : vector<8x384xf32>
    %165 = arith.divf %163, %164 : vector<8x384xf32>
    %166 = vector.extract_strided_slice %165 {offsets = [0, 0], sizes = [8, 128], strides = [1, 1]} : vector<8x384xf32> to vector<8x128xf32>
    %167 = vector.extract_strided_slice %165 {offsets = [0, 128], sizes = [8, 128], strides = [1, 1]} : vector<8x384xf32> to vector<8x128xf32>
    %168 = vector.extract_strided_slice %165 {offsets = [0, 256], sizes = [8, 128], strides = [1, 1]} : vector<8x384xf32> to vector<8x128xf32>
    %169 = vector.extract_strided_slice %159 {offsets = [0, 384], sizes = [8, 128], strides = [1, 1]} : vector<8x512xf32> to vector<8x128xf32>
    %170 = math.tanh %169 : vector<8x128xf32>
    %c0_88 = arith.constant 0 : index
    %c0_89 = arith.constant 0 : index
    %171 = vector.load %arg5[%c0_88, %c0_89] : memref<8x128xf32, #tpu.memory_space<vmem>>, vector<8x128xf32>
    %172 = arith.mulf %167, %171 : vector<8x128xf32>
    %173 = arith.mulf %166, %170 : vector<8x128xf32>
    %174 = arith.addf %172, %173 : vector<8x128xf32>
    %175 = math.tanh %174 : vector<8x128xf32>
    %176 = arith.mulf %168, %175 : vector<8x128xf32>
    %c0_90 = arith.constant 0 : index
    %c0_91 = arith.constant 0 : index
    %177 = vector.load %arg5[%c0_90, %c0_91] : memref<8x128xf32, #tpu.memory_space<vmem>>, vector<8x128xf32>
    tpu.vector_store %arg5[%c0_90, %c0_91], %174 {strides = array<i32>} : memref<8x128xf32, #tpu.memory_space<vmem>>, vector<8x128xf32>,
    %c0_92 = arith.constant 0 : index
    %c0_93 = arith.constant 0 : index
    %178 = vector.load %arg4[%c0_92, %c0_93] : memref<8x128xf32, #tpu.memory_space<vmem>>, vector<8x128xf32>
    tpu.vector_store %arg4[%c0_92, %c0_93], %176 {strides = array<i32>} : memref<8x128xf32, #tpu.memory_space<vmem>>, vector<8x128xf32>,
    %179 = arith.index_cast %c5_i32 : i32 to index
    %c0_94 = arith.constant 0 : index
    %c0_95 = arith.constant 0 : index
    %180 = vector.load %arg3[%179, %c0_94, %c0_95] : memref<8x8x128xf32, #tpu.memory_space<vmem>>, vector<1x8x128xf32>
    %181 = vector.shape_cast %180 : vector<1x8x128xf32> to vector<8x128xf32>
    %182 = vector.shape_cast %176 : vector<8x128xf32> to vector<1x8x128xf32>
    tpu.vector_store %arg3[%179, %c0_94, %c0_95], %182 {strides = array<i32>} : memref<8x8x128xf32, #tpu.memory_space<vmem>>, vector<1x8x128xf32>,
    %c6_i32 = arith.constant 6 : i32
    %183 = arith.index_cast %c6_i32 : i32 to index
    %c0_96 = arith.constant 0 : index
    %c0_97 = arith.constant 0 : index
    %184 = vector.load %arg1[%183, %c0_96, %c0_97] : memref<8x8x512xf32, #tpu.memory_space<vmem>>, vector<1x8x512xf32>
    %185 = vector.shape_cast %184 : vector<1x8x512xf32> to vector<8x512xf32>
    %c0_98 = arith.constant 0 : index
    %c0_99 = arith.constant 0 : index
    %186 = vector.load %arg4[%c0_98, %c0_99] : memref<8x128xf32, #tpu.memory_space<vmem>>, vector<8x128xf32>
    %c0_100 = arith.constant 0 : index
    %c0_101 = arith.constant 0 : index
    %187 = vector.load %arg2[%c0_100, %c0_101] : memref<128x512xf32, #tpu.memory_space<vmem>>, vector<128x512xf32>
    %cst_102 = arith.constant dense<0.000000e+00> : vector<8x512xf32>
    %188 = tpu.matmul %186, %187, %cst_102 {dimension_numbers = #tpu.dot_dimension_numbers<[1], [0], [0], [1], [0, 0, 1, 1], [], []>} : vector<8x128xf32>, vector<128x512xf32>, vector<8x512xf32> -> vector<8x512xf32>
    %189 = arith.addf %185, %188 : vector<8x512xf32>
    %190 = vector.extract_strided_slice %189 {offsets = [0, 0], sizes = [8, 384], strides = [1, 1]} : vector<8x512xf32> to vector<8x384xf32>
    %191 = arith.negf %190 : vector<8x384xf32>
    %192 = math.exp %191 : vector<8x384xf32>
    %cst_103 = arith.constant 1.000000e+00 : f32
    %193 = vector.broadcast %cst_103 : f32 to vector<8x384xf32>
    %194 = arith.addf %193, %192 : vector<8x384xf32>
    %195 = arith.divf %193, %194 : vector<8x384xf32>
    %196 = vector.extract_strided_slice %195 {offsets = [0, 0], sizes = [8, 128], strides = [1, 1]} : vector<8x384xf32> to vector<8x128xf32>
    %197 = vector.extract_strided_slice %195 {offsets = [0, 128], sizes = [8, 128], strides = [1, 1]} : vector<8x384xf32> to vector<8x128xf32>
    %198 = vector.extract_strided_slice %195 {offsets = [0, 256], sizes = [8, 128], strides = [1, 1]} : vector<8x384xf32> to vector<8x128xf32>
    %199 = vector.extract_strided_slice %189 {offsets = [0, 384], sizes = [8, 128], strides = [1, 1]} : vector<8x512xf32> to vector<8x128xf32>
    %200 = math.tanh %199 : vector<8x128xf32>
    %c0_104 = arith.constant 0 : index
    %c0_105 = arith.constant 0 : index
    %201 = vector.load %arg5[%c0_104, %c0_105] : memref<8x128xf32, #tpu.memory_space<vmem>>, vector<8x128xf32>
    %202 = arith.mulf %197, %201 : vector<8x128xf32>
    %203 = arith.mulf %196, %200 : vector<8x128xf32>
    %204 = arith.addf %202, %203 : vector<8x128xf32>
    %205 = math.tanh %204 : vector<8x128xf32>
    %206 = arith.mulf %198, %205 : vector<8x128xf32>
    %c0_106 = arith.constant 0 : index
    %c0_107 = arith.constant 0 : index
    %207 = vector.load %arg5[%c0_106, %c0_107] : memref<8x128xf32, #tpu.memory_space<vmem>>, vector<8x128xf32>
    tpu.vector_store %arg5[%c0_106, %c0_107], %204 {strides = array<i32>} : memref<8x128xf32, #tpu.memory_space<vmem>>, vector<8x128xf32>,
    %c0_108 = arith.constant 0 : index
    %c0_109 = arith.constant 0 : index
    %208 = vector.load %arg4[%c0_108, %c0_109] : memref<8x128xf32, #tpu.memory_space<vmem>>, vector<8x128xf32>
    tpu.vector_store %arg4[%c0_108, %c0_109], %206 {strides = array<i32>} : memref<8x128xf32, #tpu.memory_space<vmem>>, vector<8x128xf32>,
    %209 = arith.index_cast %c6_i32 : i32 to index
    %c0_110 = arith.constant 0 : index
    %c0_111 = arith.constant 0 : index
    %210 = vector.load %arg3[%209, %c0_110, %c0_111] : memref<8x8x128xf32, #tpu.memory_space<vmem>>, vector<1x8x128xf32>
    %211 = vector.shape_cast %210 : vector<1x8x128xf32> to vector<8x128xf32>
    %212 = vector.shape_cast %206 : vector<8x128xf32> to vector<1x8x128xf32>
    tpu.vector_store %arg3[%209, %c0_110, %c0_111], %212 {strides = array<i32>} : memref<8x8x128xf32, #tpu.memory_space<vmem>>, vector<1x8x128xf32>,
    %c7_i32 = arith.constant 7 : i32
    %213 = arith.index_cast %c7_i32 : i32 to index
    %c0_112 = arith.constant 0 : index
    %c0_113 = arith.constant 0 : index
    %214 = vector.load %arg1[%213, %c0_112, %c0_113] : memref<8x8x512xf32, #tpu.memory_space<vmem>>, vector<1x8x512xf32>
    %215 = vector.shape_cast %214 : vector<1x8x512xf32> to vector<8x512xf32>
    %c0_114 = arith.constant 0 : index
    %c0_115 = arith.constant 0 : index
    %216 = vector.load %arg4[%c0_114, %c0_115] : memref<8x128xf32, #tpu.memory_space<vmem>>, vector<8x128xf32>
    %c0_116 = arith.constant 0 : index
    %c0_117 = arith.constant 0 : index
    %217 = vector.load %arg2[%c0_116, %c0_117] : memref<128x512xf32, #tpu.memory_space<vmem>>, vector<128x512xf32>
    %cst_118 = arith.constant dense<0.000000e+00> : vector<8x512xf32>
    %218 = tpu.matmul %216, %217, %cst_118 {dimension_numbers = #tpu.dot_dimension_numbers<[1], [0], [0], [1], [0, 0, 1, 1], [], []>} : vector<8x128xf32>, vector<128x512xf32>, vector<8x512xf32> -> vector<8x512xf32>
    %219 = arith.addf %215, %218 : vector<8x512xf32>
    %220 = vector.extract_strided_slice %219 {offsets = [0, 0], sizes = [8, 384], strides = [1, 1]} : vector<8x512xf32> to vector<8x384xf32>
    %221 = arith.negf %220 : vector<8x384xf32>
    %222 = math.exp %221 : vector<8x384xf32>
    %cst_119 = arith.constant 1.000000e+00 : f32
    %223 = vector.broadcast %cst_119 : f32 to vector<8x384xf32>
    %224 = arith.addf %223, %222 : vector<8x384xf32>
    %225 = arith.divf %223, %224 : vector<8x384xf32>
    %226 = vector.extract_strided_slice %225 {offsets = [0, 0], sizes = [8, 128], strides = [1, 1]} : vector<8x384xf32> to vector<8x128xf32>
    %227 = vector.extract_strided_slice %225 {offsets = [0, 128], sizes = [8, 128], strides = [1, 1]} : vector<8x384xf32> to vector<8x128xf32>
    %228 = vector.extract_strided_slice %225 {offsets = [0, 256], sizes = [8, 128], strides = [1, 1]} : vector<8x384xf32> to vector<8x128xf32>
    %229 = vector.extract_strided_slice %219 {offsets = [0, 384], sizes = [8, 128], strides = [1, 1]} : vector<8x512xf32> to vector<8x128xf32>
    %230 = math.tanh %229 : vector<8x128xf32>
    %c0_120 = arith.constant 0 : index
    %c0_121 = arith.constant 0 : index
    %231 = vector.load %arg5[%c0_120, %c0_121] : memref<8x128xf32, #tpu.memory_space<vmem>>, vector<8x128xf32>
    %232 = arith.mulf %227, %231 : vector<8x128xf32>
    %233 = arith.mulf %226, %230 : vector<8x128xf32>
    %234 = arith.addf %232, %233 : vector<8x128xf32>
    %235 = math.tanh %234 : vector<8x128xf32>
    %236 = arith.mulf %228, %235 : vector<8x128xf32>
    %c0_122 = arith.constant 0 : index
    %c0_123 = arith.constant 0 : index
    %237 = vector.load %arg5[%c0_122, %c0_123] : memref<8x128xf32, #tpu.memory_space<vmem>>, vector<8x128xf32>
    tpu.vector_store %arg5[%c0_122, %c0_123], %234 {strides = array<i32>} : memref<8x128xf32, #tpu.memory_space<vmem>>, vector<8x128xf32>,
    %c0_124 = arith.constant 0 : index
    %c0_125 = arith.constant 0 : index
    %238 = vector.load %arg4[%c0_124, %c0_125] : memref<8x128xf32, #tpu.memory_space<vmem>>, vector<8x128xf32>
    tpu.vector_store %arg4[%c0_124, %c0_125], %236 {strides = array<i32>} : memref<8x128xf32, #tpu.memory_space<vmem>>, vector<8x128xf32>,
    %239 = arith.index_cast %c7_i32 : i32 to index
    %c0_126 = arith.constant 0 : index
    %c0_127 = arith.constant 0 : index
    %240 = vector.load %arg3[%239, %c0_126, %c0_127] : memref<8x8x128xf32, #tpu.memory_space<vmem>>, vector<1x8x128xf32>
    %241 = vector.shape_cast %240 : vector<1x8x128xf32> to vector<8x128xf32>
    %242 = vector.shape_cast %236 : vector<8x128xf32> to vector<1x8x128xf32>
    tpu.vector_store %arg3[%239, %c0_126, %c0_127], %242 {strides = array<i32>} : memref<8x8x128xf32, #tpu.memory_space<vmem>>, vector<1x8x128xf32>,
    %c8_i32 = arith.constant 8 : i32
    return
  }
  func.func @transform_0(%arg0: i32) -> (i32, i32, i32) {
    %c0_i32 = arith.constant 0 : i32
    %c0_i32_0 = arith.constant 0 : i32
    %c0_i32_1 = arith.constant 0 : i32
    return %arg0, %c0_i32, %c0_i32_0 : i32, i32, i32
  }
  func.func @transform_1(%arg0: i32) -> (i32, i32) {
    %c0_i32 = arith.constant 0 : i32
    %c0_i32_0 = arith.constant 0 : i32
    %c0_i32_1 = arith.constant 0 : i32
    return %c0_i32, %c0_i32_0 : i32, i32
  }
  func.func @transform_2(%arg0: i32) -> (i32, i32, i32) {
    %c0_i32 = arith.constant 0 : i32
    %c0_i32_0 = arith.constant 0 : i32
    %c0_i32_1 = arith.constant 0 : i32
    return %arg0, %c0_i32, %c0_i32_0 : i32, i32, i32
  }
}

</mosaic_0001>

<llo_original>
// kernel: tpu_custom_call.1
$region0: #{tpu_custom_call.1}
  #allocation0 [shape = 'u32[]', space=smem, size = 0x4, offset = 0x4, fixed_abs, tag = 'smem constant byte address 0x4 - core index']
  #allocation1 [shape = 'u32[144,128]{1,0:T(1,128)}', space=vmem, size = 0x12000, scoped, tag = 'internal scratch']
  #allocation2 [shape = 'f32[8,128]{1,0:T(8,128)}', space=vmem, size = 0x1000, scoped, tag = 'scratch operand']
  #allocation3 [shape = 'f32[8,128]{1,0:T(8,128)}', space=vmem, size = 0x1000, scoped, tag = 'scratch operand']
  %s0 = inlined_call_operand.hbm [shape: f32[8,8,512], index: 0, kind: input, shape index: {}]
  %s1 = inlined_call_operand.hbm [shape: f32[128,512], index: 1, kind: input, shape index: {}]
  %s2 = inlined_call_operand.hbm [shape: f32[8,8,128], index: 2, kind: output, shape index: {}]
  %s3 = sld [smem:[#allocation0]]
  $region30: #{tpu_custom_call.1} parent=0
    _
  %s5 = ssub.s32 1, %s3
  %s6 = scalar_select 0, %s5, %s3
  $region1: #{tpu_custom_call.1} parent=0
    #allocation4 [shape = 'u8[131072]{0}', space=vmem, size = 0x20000, scoped, tag = 'input window, operand 0, single buffered']
    #allocation5 [shape = 's32[1]{0}', space=sflag, size = 0x4, scoped, tag = 'scoped memory for tpu_custom_call.1']
    #allocation6 [shape = 's32[1]{0}', space=sflag, size = 0x4, scoped, tag = 'scoped memory for tpu_custom_call.1']
    #allocation7 [shape = 'u8[262144]{0}', space=vmem, size = 0x40000, scoped, tag = 'input window, operand 1, single buffered']
    #allocation8 [shape = 's32[1]{0}', space=sflag, size = 0x4, scoped, tag = 'scoped memory for tpu_custom_call.1']
    #allocation9 [shape = 'u8[32768]{0}', space=vmem, size = 0x8000, scoped, tag = 'output window, operand 0, single buffered']
    %7 = vsyncpa [#allocation5], 0
    %8 = vsyncpa [#allocation8], 0
    %9 = vsyncpa [#allocation6], 0
    // Predicated region
    $region2: #{tpu_custom_call.1} parent=1 // pred_check
      _
    $region3: #{tpu_custom_call.1} parent=1 // pred_check_branch
      %11 = sbr.rel (0) target = $region5
    $region4: #{tpu_custom_call.1} parent=1 // pred_region
      %s13 = ssub.s32 4096, 4096
      %14 = vsyncadd [#allocation5], %s13
      %s15 = sshll.u32 [#allocation4], 4
      %s16 = int_to_ptr.vmem [resolvable:$true] %s15
      %21 = dma.hbm_to_vmem [thread:$0]  %s0, 4096, %s16, [#allocation5], 512, 512, 32
    $region5: #{tpu_custom_call.1} parent=1 // pred_fallthru
      _
    // Predicated region
    $region6: #{tpu_custom_call.1} parent=1 // pred_check
      _
    $region7: #{tpu_custom_call.1} parent=1 // pred_check_branch
      %23 = sbr.rel (0) target = $region9
    $region8: #{tpu_custom_call.1} parent=1 // pred_region
      %s25 = ssub.s32 8192, 8192
      %26 = vsyncadd [#allocation8], %s25
      %s27 = sshll.u32 [#allocation7], 4
      %s28 = int_to_ptr.vmem [resolvable:$true] %s27
      %33 = dma.hbm_to_vmem [thread:$0]  %s1, 8192, %s28, [#allocation8], 512, 512, 32
    $region9: #{tpu_custom_call.1} parent=1 // pred_fallthru
      _
    // Predicated region
    $region10: #{tpu_custom_call.1} parent=1 // pred_check
      _
    $region11: #{tpu_custom_call.1} parent=1 // pred_check_branch
      %35 = sbr.rel (0) target = $region13
    $region12: #{tpu_custom_call.1} parent=1 // pred_region
      %36 = dma.done [#allocation5], 4096
    $region13: #{tpu_custom_call.1} parent=1 // pred_fallthru
      _
    // Predicated region
    $region14: #{tpu_custom_call.1} parent=1 // pred_check
      _
    $region15: #{tpu_custom_call.1} parent=1 // pred_check_branch
      %38 = sbr.rel (0) target = $region17
    $region16: #{tpu_custom_call.1} parent=1 // pred_region
      %39 = dma.done [#allocation8], 8192
    $region17: #{tpu_custom_call.1} parent=1 // pred_fallthru
      _
    %p40 = scmp.eq.s32.totalorder 0, 0
    // Predicated region
    $region18: #{tpu_custom_call.1} parent=1 // pred_check
      %p41 = pneg %p40
    $region19: #{tpu_custom_call.1} parent=1 // pred_check_branch
      %43 = sbr.rel (%p41) target = $region21
    $region20: #{tpu_custom_call.1} parent=1 // pred_region
      %44 = vst [vmem:[#allocation2] sm:$0xff] 0.0
      %45 = vst [vmem:[#allocation3] sm:$0xff] 0.0
    $region21: #{tpu_custom_call.1} parent=1 // pred_fallthru
      _
    %v46 = vld [vmem:[#allocation4] sm:$0xff]
    %v47 = vld [vmem:[#allocation4 + $0x8] sm:$0xff]
    %v48 = vld [vmem:[#allocation4 + $0x10] sm:$0xff]
    %v49 = vld [vmem:[#allocation4 + $0x18] sm:$0xff]
    %v50 = vld [vmem:[#allocation2] sm:$0xff]
    %v51 = vld [vmem:[#allocation7] sm:$0xff]
    %v52 = vld [vmem:[#allocation7 + $0x8] sm:$0xff]
    %v53 = vld [vmem:[#allocation7 + $0x10] sm:$0xff]
    %v54 = vld [vmem:[#allocation7 + $0x18] sm:$0xff]
    %v55 = vld [vmem:[#allocation7 + $0x20] sm:$0xff]
    %v56 = vld [vmem:[#allocation7 + $0x28] sm:$0xff]
    %v57 = vld [vmem:[#allocation7 + $0x30] sm:$0xff]
    %v58 = vld [vmem:[#allocation7 + $0x38] sm:$0xff]
    %v59 = vld [vmem:[#allocation7 + $0x40] sm:$0xff]
    %v60 = vld [vmem:[#allocation7 + $0x48] sm:$0xff]
    %v61 = vld [vmem:[#allocation7 + $0x50] sm:$0xff]
    %v62 = vld [vmem:[#allocation7 + $0x58] sm:$0xff]
    %v63 = vld [vmem:[#allocation7 + $0x60] sm:$0xff]
    %v64 = vld [vmem:[#allocation7 + $0x68] sm:$0xff]
    %v65 = vld [vmem:[#allocation7 + $0x70] sm:$0xff]
    %v66 = vld [vmem:[#allocation7 + $0x78] sm:$0xff]
    %v67 = vld [vmem:[#allocation7 + $0x80] sm:$0xff]
    %v68 = vld [vmem:[#allocation7 + $0x88] sm:$0xff]
    %v69 = vld [vmem:[#allocation7 + $0x90] sm:$0xff]
    %v70 = vld [vmem:[#allocation7 + $0x98] sm:$0xff]
    %v71 = vld [vmem:[#allocation7 + $0xa0] sm:$0xff]
    %v72 = vld [vmem:[#allocation7 + $0xa8] sm:$0xff]
    %v73 = vld [vmem:[#allocation7 + $0xb0] sm:$0xff]
    %v74 = vld [vmem:[#allocation7 + $0xb8] sm:$0xff]
    %v75 = vld [vmem:[#allocation7 + $0xc0] sm:$0xff]
    %v76 = vld [vmem:[#allocation7 + $0xc8] sm:$0xff]
    %v77 = vld [vmem:[#allocation7 + $0xd0] sm:$0xff]
    %v78 = vld [vmem:[#allocation7 + $0xd8] sm:$0xff]
    %v79 = vld [vmem:[#allocation7 + $0xe0] sm:$0xff]
    %v80 = vld [vmem:[#allocation7 + $0xe8] sm:$0xff]
    %v81 = vld [vmem:[#allocation7 + $0xf0] sm:$0xff]
    %v82 = vld [vmem:[#allocation7 + $0xf8] sm:$0xff]
    %v83 = vld [vmem:[#allocation7 + $0x100] sm:$0xff]
    %v84 = vld [vmem:[#allocation7 + $0x108] sm:$0xff]
    %v85 = vld [vmem:[#allocation7 + $0x110] sm:$0xff]
    %v86 = vld [vmem:[#allocation7 + $0x118] sm:$0xff]
    %v87 = vld [vmem:[#allocation7 + $0x120] sm:$0xff]
    %v88 = vld [vmem:[#allocation7 + $0x128] sm:$0xff]
    %v89 = vld [vmem:[#allocation7 + $0x130] sm:$0xff]
    %v90 = vld [vmem:[#allocation7 + $0x138] sm:$0xff]
    %v91 = vld [vmem:[#allocation7 + $0x140] sm:$0xff]
    %v92 = vld [vmem:[#allocation7 + $0x148] sm:$0xff]
    %v93 = vld [vmem:[#allocation7 + $0x150] sm:$0xff]
    %v94 = vld [vmem:[#allocation7 + $0x158] sm:$0xff]
    %v95 = vld [vmem:[#allocation7 + $0x160] sm:$0xff]
    %v96 = vld [vmem:[#allocation7 + $0x168] sm:$0xff]
    %v97 = vld [vmem:[#allocation7 + $0x170] sm:$0xff]
    %v98 = vld [vmem:[#allocation7 + $0x178] sm:$0xff]
    %v99 = vld [vmem:[#allocation7 + $0x180] sm:$0xff]
    %v100 = vld [vmem:[#allocation7 + $0x188] sm:$0xff]
    %v101 = vld [vmem:[#allocation7 + $0x190] sm:$0xff]
    %v102 = vld [vmem:[#allocation7 + $0x198] sm:$0xff]
    %v103 = vld [vmem:[#allocation7 + $0x1a0] sm:$0xff]
    %v104 = vld [vmem:[#allocation7 + $0x1a8] sm:$0xff]
    %v105 = vld [vmem:[#allocation7 + $0x1b0] sm:$0xff]
    %v106 = vld [vmem:[#allocation7 + $0x1b8] sm:$0xff]
    %v107 = vld [vmem:[#allocation7 + $0x1c0] sm:$0xff]
    %v108 = vld [vmem:[#allocation7 + $0x1c8] sm:$0xff]
    %v109 = vld [vmem:[#allocation7 + $0x1d0] sm:$0xff]
    %v110 = vld [vmem:[#allocation7 + $0x1d8] sm:$0xff]
    %v111 = vld [vmem:[#allocation7 + $0x1e0] sm:$0xff]
    %v112 = vld [vmem:[#allocation7 + $0x1e8] sm:$0xff]
    %v113 = vld [vmem:[#allocation7 + $0x1f0] sm:$0xff]
    %v114 = vld [vmem:[#allocation7 + $0x1f8] sm:$0xff]
    %115 = vmatprep.subr.mxu0 %v52
    %116 = vmatpush1.msra.mxu0 %v51
    %117 = vmatprep.subr.mxu0 %v56
    %118 = vmatpush1.msra.mxu0 %v55
    %119 = vmatprep.subr.mxu0 %v60
    %120 = vmatpush1.msra.mxu0 %v59
    %121 = vmatprep.subr.mxu0 %v64
    %122 = vmatpush1.msra.mxu0 %v63
    %123 = vmatprep.subr.mxu0 %v68
    %124 = vmatpush1.msra.mxu0 %v67
    %125 = vmatprep.subr.mxu0 %v72
    %126 = vmatpush1.msra.mxu0 %v71
    %127 = vmatprep.subr.mxu0 %v76
    %128 = vmatpush1.msra.mxu0 %v75
    %129 = vmatprep.subr.mxu0 %v80
    %130 = vmatpush1.msra.mxu0 %v79
    %131 = vmatprep.subr.mxu0 %v84
    %132 = vmatpush1.msra.mxu0 %v83
    %133 = vmatprep.subr.mxu0 %v88
    %134 = vmatpush1.msra.mxu0 %v87
    %135 = vmatprep.subr.mxu0 %v92
    %136 = vmatpush1.msra.mxu0 %v91
    %137 = vmatprep.subr.mxu0 %v96
    %138 = vmatpush1.msra.mxu0 %v95
    %139 = vmatprep.subr.mxu0 %v100
    %140 = vmatpush1.msra.mxu0 %v99
    %141 = vmatprep.subr.mxu0 %v104
    %142 = vmatpush1.msra.mxu0 %v103
    %143 = vmatprep.subr.mxu0 %v108
    %144 = vmatpush1.msra.mxu0 %v107
    %145 = vmatprep.subr.mxu0 %v112
    %146 = vmatpush1.msra.mxu0 %v111
    %147 = vmatprep.subr.mxu0 0.0
    %148 = vmatpush1.msra.mxu0 0.0
    %149 = vmatprep.subr.mxu0 0.0
    %150 = vmatpush1.msra.mxu0 0.0
    %151 = vmatprep.subr.mxu0 0.0
    %152 = vmatpush1.msra.mxu0 0.0
    %153 = vmatprep.subr.mxu0 0.0
    %154 = vmatpush1.msra.mxu0 0.0
    %155 = vmatprep.subr.mxu0 0.0
    %156 = vmatpush1.msra.mxu0 0.0
    %157 = vmatprep.subr.mxu0 0.0
    %158 = vmatpush1.msra.mxu0 0.0
    %159 = vmatprep.subr.mxu0 0.0
    %160 = vmatpush1.msra.mxu0 0.0
    %161 = vmatprep.subr.mxu0 0.0
    %162 = vmatpush1.msra.mxu0 0.0
    %163 = vmatprep.subr.mxu0 0.0
    %164 = vmatpush1.msra.mxu0 0.0
    %165 = vmatprep.subr.mxu0 0.0
    %166 = vmatpush1.msra.mxu0 0.0
    %167 = vmatprep.subr.mxu0 0.0
    %168 = vmatpush1.msra.mxu0 0.0
    %169 = vmatprep.subr.mxu0 0.0
    %170 = vmatpush1.msra.mxu0 0.0
    %171 = vmatprep.subr.mxu0 0.0
    %172 = vmatpush1.msra.mxu0 0.0
    %173 = vmatprep.subr.mxu0 0.0
    %174 = vmatpush1.msra.mxu0 0.0
    %175 = vmatprep.subr.mxu0 0.0
    %176 = vmatpush1.msra.mxu0 0.0
    %177 = vmatprep.subr.mxu0 0.0
    %178 = vmatpush1.msra.mxu0 0.0
    %179 = vmatprep.mubr.f32.mxu0 0.0
    %180 = vmatmul.mubr.f32.gmra.mrb[0].mxu0 %v50
    %v181 = vpop.f32.mrb[0].mxu0
    %v182 = vadd.f32 0.0, %v181
    %v183 = vpop.f32.mrb[0].mxu0
    %v184 = vadd.f32 0.0, %v183
    %185 = vdwg.mxu0
    %186 = vmatprep.subr.mxu0 %v54
    %187 = vmatpush1.msra.mxu0 %v53
    %188 = vmatprep.subr.mxu0 %v58
    %189 = vmatpush1.msra.mxu0 %v57
    %190 = vmatprep.subr.mxu0 %v62
    %191 = vmatpush1.msra.mxu0 %v61
    %192 = vmatprep.subr.mxu0 %v66
    %193 = vmatpush1.msra.mxu0 %v65
    %194 = vmatprep.subr.mxu0 %v70
    %195 = vmatpush1.msra.mxu0 %v69
    %196 = vmatprep.subr.mxu0 %v74
    %197 = vmatpush1.msra.mxu0 %v73
    %198 = vmatprep.subr.mxu0 %v78
    %199 = vmatpush1.msra.mxu0 %v77
    %200 = vmatprep.subr.mxu0 %v82
    %201 = vmatpush1.msra.mxu0 %v81
    %202 = vmatprep.subr.mxu0 %v86
    %203 = vmatpush1.msra.mxu0 %v85
    %204 = vmatprep.subr.mxu0 %v90
    %205 = vmatpush1.msra.mxu0 %v89
    %206 = vmatprep.subr.mxu0 %v94
    %207 = vmatpush1.msra.mxu0 %v93
    %208 = vmatprep.subr.mxu0 %v98
    %209 = vmatpush1.msra.mxu0 %v97
    %210 = vmatprep.subr.mxu0 %v102
    %211 = vmatpush1.msra.mxu0 %v101
    %212 = vmatprep.subr.mxu0 %v106
    %213 = vmatpush1.msra.mxu0 %v105
    %214 = vmatprep.subr.mxu0 %v110
    %215 = vmatpush1.msra.mxu0 %v109
    %216 = vmatprep.subr.mxu0 %v114
    %217 = vmatpush1.msra.mxu0 %v113
    %218 = vmatprep.subr.mxu0 0.0
    %219 = vmatpush1.msra.mxu0 0.0
    %220 = vmatprep.subr.mxu0 0.0
    %221 = vmatpush1.msra.mxu0 0.0
    %222 = vmatprep.subr.mxu0 0.0
    %223 = vmatpush1.msra.mxu0 0.0
    %224 = vmatprep.subr.mxu0 0.0
    %225 = vmatpush1.msra.mxu0 0.0
    %226 = vmatprep.subr.mxu0 0.0
    %227 = vmatpush1.msra.mxu0 0.0
    %228 = vmatprep.subr.mxu0 0.0
    %229 = vmatpush1.msra.mxu0 0.0
    %230 = vmatprep.subr.mxu0 0.0
    %231 = vmatpush1.msra.mxu0 0.0
    %232 = vmatprep.subr.mxu0 0.0
    %233 = vmatpush1.msra.mxu0 0.0
    %234 = vmatprep.subr.mxu0 0.0
    %235 = vmatpush1.msra.mxu0 0.0
    %236 = vmatprep.subr.mxu0 0.0
    %237 = vmatpush1.msra.mxu0 0.0
    %238 = vmatprep.subr.mxu0 0.0
    %239 = vmatpush1.msra.mxu0 0.0
    %240 = vmatprep.subr.mxu0 0.0
    %241 = vmatpush1.msra.mxu0 0.0
    %242 = vmatprep.subr.mxu0 0.0
    %243 = vmatpush1.msra.mxu0 0.0
    %244 = vmatprep.subr.mxu0 0.0
    %245 = vmatpush1.msra.mxu0 0.0
    %246 = vmatprep.subr.mxu0 0.0
    %247 = vmatpush1.msra.mxu0 0.0
    %248 = vmatprep.subr.mxu0 0.0
    %249 = vmatpush1.msra.mxu0 0.0
    %250 = vmatprep.mubr.f32.mxu0 0.0
    %251 = vmatmul.mubr.f32.gmra.mrb[0].mxu0 %v50
    %v252 = vpop.f32.mrb[0].mxu0
    %v253 = vadd.f32 0.0, %v252
    %v254 = vpop.f32.mrb[0].mxu0
    %v255 = vadd.f32 0.0, %v254
    %256 = vdwg.mxu0
    %v257 = vadd.f32 %v46, %v182
    %v258 = vadd.f32 %v47, %v184
    %v259 = vadd.f32 %v48, %v253
    %v260 = vadd.f32 %v49, %v255
    %v261 = vxor.u32 %v257, 2147483648
    %v262 = vxor.u32 %v258, 2147483648
    %v263 = vxor.u32 %v259, 2147483648
    %v264 = vmul.f32 %v261, 1.442695
    %v265 = vpow.pop %v264
    %v266 = vmul.f32 %v262, 1.442695
    %v267 = vpow.pop %v266
    %v268 = vmul.f32 %v263, 1.442695
    %v269 = vpow.pop %v268
    %v270 = vadd.f32 %v265, 1.0
    %v271 = vadd.f32 %v267, 1.0
    %v272 = vadd.f32 %v269, 1.0
    %v273 = vrcp.pop %v270
    %v274 = vmul.f32 1.0, %v273
    %v275 = vrcp.pop %v271
    %v276 = vmul.f32 1.0, %v275
    %v277 = vrcp.pop %v272
    %v278 = vmul.f32 1.0, %v277
    %v279 = vtanh.pop %v260
    %v280 = vld [vmem:[#allocation3] sm:$0xff]
    %v281 = vmul.f32 %v276, %v280
    %v282 = vmul.f32 %v274, %v279
    %v283 = vadd.f32 %v281, %v282
    %v284 = vtanh.pop %v283
    %v285 = vmul.f32 %v278, %v284
    %286 = vst [vmem:[#allocation3] sm:$0xff] %v283
    %287 = vst [vmem:[#allocation2] sm:$0xff] %v285
    %288 = vst [vmem:[#allocation9] sm:$0xff] %v285
    %s289 = scalar_lea.vmem [#allocation4], 32
    %v290 = vld [vmem:[%s289] sm:$0xff]
    %v291 = vld [vmem:[%s289 + $0x8] sm:$0xff]
    %v292 = vld [vmem:[%s289 + $0x10] sm:$0xff]
    %v293 = vld [vmem:[%s289 + $0x18] sm:$0xff]
    %v294 = vld [vmem:[#allocation2] sm:$0xff]
    %v295 = vld [vmem:[#allocation7] sm:$0xff]
    %v296 = vld [vmem:[#allocation7 + $0x8] sm:$0xff]
    %v297 = vld [vmem:[#allocation7 + $0x10] sm:$0xff]
    %v298 = vld [vmem:[#allocation7 + $0x18] sm:$0xff]
    %v299 = vld [vmem:[#allocation7 + $0x20] sm:$0xff]
    %v300 = vld [vmem:[#allocation7 + $0x28] sm:$0xff]
    %v301 = vld [vmem:[#allocation7 + $0x30] sm:$0xff]
    %v302 = vld [vmem:[#allocation7 + $0x38] sm:$0xff]
    %v303 = vld [vmem:[#allocation7 + $0x40] sm:$0xff]
    %v304 = vld [vmem:[#allocation7 + $0x48] sm:$0xff]
    %v305 = vld [vmem:[#allocation7 + $0x50] sm:$0xff]
    %v306 = vld [vmem:[#allocation7 + $0x58] sm:$0xff]
    %v307 = vld [vmem:[#allocation7 + $0x60] sm:$0xff]
    %v308 = vld [vmem:[#allocation7 + $0x68] sm:$0xff]
    %v309 = vld [vmem:[#allocation7 + $0x70] sm:$0xff]
    %v310 = vld [vmem:[#allocation7 + $0x78] sm:$0xff]
    %v311 = vld [vmem:[#allocation7 + $0x80] sm:$0xff]
    %v312 = vld [vmem:[#allocation7 + $0x88] sm:$0xff]
    %v313 = vld [vmem:[#allocation7 + $0x90] sm:$0xff]
    %v314 = vld [vmem:[#allocation7 + $0x98] sm:$0xff]
    %v315 = vld [vmem:[#allocation7 + $0xa0] sm:$0xff]
    %v316 = vld [vmem:[#allocation7 + $0xa8] sm:$0xff]
    %v317 = vld [vmem:[#allocation7 + $0xb0] sm:$0xff]
    %v318 = vld [vmem:[#allocation7 + $0xb8] sm:$0xff]
    %v319 = vld [vmem:[#allocation7 + $0xc0] sm:$0xff]
    %v320 = vld [vmem:[#allocation7 + $0xc8] sm:$0xff]
    %v321 = vld [vmem:[#allocation7 + $0xd0] sm:$0xff]
    %v322 = vld [vmem:[#allocation7 + $0xd8] sm:$0xff]
    %v323 = vld [vmem:[#allocation7 + $0xe0] sm:$0xff]
    %v324 = vld [vmem:[#allocation7 + $0xe8] sm:$0xff]
    %v325 = vld [vmem:[#allocation7 + $0xf0] sm:$0xff]
    %v326 = vld [vmem:[#allocation7 + $0xf8] sm:$0xff]
    %v327 = vld [vmem:[#allocation7 + $0x100] sm:$0xff]
    %v328 = vld [vmem:[#allocation7 + $0x108] sm:$0xff]
    %v329 = vld [vmem:[#allocation7 + $0x110] sm:$0xff]
    %v330 = vld [vmem:[#allocation7 + $0x118] sm:$0xff]
    %v331 = vld [vmem:[#allocation7 + $0x120] sm:$0xff]
    %v332 = vld [vmem:[#allocation7 + $0x128] sm:$0xff]
    %v333 = vld [vmem:[#allocation7 + $0x130] sm:$0xff]
    %v334 = vld [vmem:[#allocation7 + $0x138] sm:$0xff]
    %v335 = vld [vmem:[#allocation7 + $0x140] sm:$0xff]
    %v336 = vld [vmem:[#allocation7 + $0x148] sm:$0xff]
    %v337 = vld [vmem:[#allocation7 + $0x150] sm:$0xff]
    %v338 = vld [vmem:[#allocation7 + $0x158] sm:$0xff]
    %v339 = vld [vmem:[#allocation7 + $0x160] sm:$0xff]
    %v340 = vld [vmem:[#allocation7 + $0x168] sm:$0xff]
    %v341 = vld [vmem:[#allocation7 + $0x170] sm:$0xff]
    %v342 = vld [vmem:[#allocation7 + $0x178] sm:$0xff]
    %v343 = vld [vmem:[#allocation7 + $0x180] sm:$0xff]
    %v344 = vld [vmem:[#allocation7 + $0x188] sm:$0xff]
    %v345 = vld [vmem:[#allocation7 + $0x190] sm:$0xff]
    %v346 = vld [vmem:[#allocation7 + $0x198] sm:$0xff]
    %v347 = vld [vmem:[#allocation7 + $0x1a0] sm:$0xff]
    %v348 = vld [vmem:[#allocation7 + $0x1a8] sm:$0xff]
    %v349 = vld [vmem:[#allocation7 + $0x1b0] sm:$0xff]
    %v350 = vld [vmem:[#allocation7 + $0x1b8] sm:$0xff]
    %v351 = vld [vmem:[#allocation7 + $0x1c0] sm:$0xff]
    %v352 = vld [vmem:[#allocation7 + $0x1c8] sm:$0xff]
    %v353 = vld [vmem:[#allocation7 + $0x1d0] sm:$0xff]
    %v354 = vld [vmem:[#allocation7 + $0x1d8] sm:$0xff]
    %v355 = vld [vmem:[#allocation7 + $0x1e0] sm:$0xff]
    %v356 = vld [vmem:[#allocation7 + $0x1e8] sm:$0xff]
    %v357 = vld [vmem:[#allocation7 + $0x1f0] sm:$0xff]
    %v358 = vld [vmem:[#allocation7 + $0x1f8] sm:$0xff]
    %359 = vmatprep.subr.mxu0 %v296
    %360 = vmatpush1.msra.mxu0 %v295
    %361 = vmatprep.subr.mxu0 %v300
    %362 = vmatpush1.msra.mxu0 %v299
    %363 = vmatprep.subr.mxu0 %v304
    %364 = vmatpush1.msra.mxu0 %v303
    %365 = vmatprep.subr.mxu0 %v308
    %366 = vmatpush1.msra.mxu0 %v307
    %367 = vmatprep.subr.mxu0 %v312
    %368 = vmatpush1.msra.mxu0 %v311
    %369 = vmatprep.subr.mxu0 %v316
    %370 = vmatpush1.msra.mxu0 %v315
    %371 = vmatprep.subr.mxu0 %v320
    %372 = vmatpush1.msra.mxu0 %v319
    %373 = vmatprep.subr.mxu0 %v324
    %374 = vmatpush1.msra.mxu0 %v323
    %375 = vmatprep.subr.mxu0 %v328
    %376 = vmatpush1.msra.mxu0 %v327
    %377 = vmatprep.subr.mxu0 %v332
    %378 = vmatpush1.msra.mxu0 %v331
    %379 = vmatprep.subr.mxu0 %v336
    %380 = vmatpush1.msra.mxu0 %v335
    %381 = vmatprep.subr.mxu0 %v340
    %382 = vmatpush1.msra.mxu0 %v339
    %383 = vmatprep.subr.mxu0 %v344
    %384 = vmatpush1.msra.mxu0 %v343
    %385 = vmatprep.subr.mxu0 %v348
    %386 = vmatpush1.msra.mxu0 %v347
    %387 = vmatprep.subr.mxu0 %v352
    %388 = vmatpush1.msra.mxu0 %v351
    %389 = vmatprep.subr.mxu0 %v356
    %390 = vmatpush1.msra.mxu0 %v355
    %391 = vmatprep.subr.mxu0 0.0
    %392 = vmatpush1.msra.mxu0 0.0
    %393 = vmatprep.subr.mxu0 0.0
    %394 = vmatpush1.msra.mxu0 0.0
    %395 = vmatprep.subr.mxu0 0.0
    %396 = vmatpush1.msra.mxu0 0.0
    %397 = vmatprep.subr.mxu0 0.0
    %398 = vmatpush1.msra.mxu0 0.0
    %399 = vmatprep.subr.mxu0 0.0
    %400 = vmatpush1.msra.mxu0 0.0
    %401 = vmatprep.subr.mxu0 0.0
    %402 = vmatpush1.msra.mxu0 0.0
    %403 = vmatprep.subr.mxu0 0.0
    %404 = vmatpush1.msra.mxu0 0.0
    %405 = vmatprep.subr.mxu0 0.0
    %406 = vmatpush1.msra.mxu0 0.0
    %407 = vmatprep.subr.mxu0 0.0
    %408 = vmatpush1.msra.mxu0 0.0
    %409 = vmatprep.subr.mxu0 0.0
    %410 = vmatpush1.msra.mxu0 0.0
    %411 = vmatprep.subr.mxu0 0.0
    %412 = vmatpush1.msra.mxu0 0.0
    %413 = vmatprep.subr.mxu0 0.0
    %414 = vmatpush1.msra.mxu0 0.0
    %415 = vmatprep.subr.mxu0 0.0
    %416 = vmatpush1.msra.mxu0 0.0
    %417 = vmatprep.subr.mxu0 0.0
    %418 = vmatpush1.msra.mxu0 0.0
    %419 = vmatprep.subr.mxu0 0.0
    %420 = vmatpush1.msra.mxu0 0.0
    %421 = vmatprep.subr.mxu0 0.0
    %422 = vmatpush1.msra.mxu0 0.0
    %423 = vmatprep.mubr.f32.mxu0 0.0
    %424 = vmatmul.mubr.f32.gmra.mrb[0].mxu0 %v294
    %v425 = vpop.f32.mrb[0].mxu0
    %v426 = vadd.f32 0.0, %v425
    %v427 = vpop.f32.mrb[0].mxu0
    %v428 = vadd.f32 0.0, %v427
    %429 = vdwg.mxu0
    %430 = vmatprep.subr.mxu0 %v298
    %431 = vmatpush1.msra.mxu0 %v297
    %432 = vmatprep.subr.mxu0 %v302
    %433 = vmatpush1.msra.mxu0 %v301
    %434 = vmatprep.subr.mxu0 %v306
    %435 = vmatpush1.msra.mxu0 %v305
    %436 = vmatprep.subr.mxu0 %v310
    %437 = vmatpush1.msra.mxu0 %v309
    %438 = vmatprep.subr.mxu0 %v314
    %439 = vmatpush1.msra.mxu0 %v313
    %440 = vmatprep.subr.mxu0 %v318
    %441 = vmatpush1.msra.mxu0 %v317
    %442 = vmatprep.subr.mxu0 %v322
    %443 = vmatpush1.msra.mxu0 %v321
    %444 = vmatprep.subr.mxu0 %v326
    %445 = vmatpush1.msra.mxu0 %v325
    %446 = vmatprep.subr.mxu0 %v330
    %447 = vmatpush1.msra.mxu0 %v329
    %448 = vmatprep.subr.mxu0 %v334
    %449 = vmatpush1.msra.mxu0 %v333
    %450 = vmatprep.subr.mxu0 %v338
    %451 = vmatpush1.msra.mxu0 %v337
    %452 = vmatprep.subr.mxu0 %v342
    %453 = vmatpush1.msra.mxu0 %v341
    %454 = vmatprep.subr.mxu0 %v346
    %455 = vmatpush1.msra.mxu0 %v345
    %456 = vmatprep.subr.mxu0 %v350
    %457 = vmatpush1.msra.mxu0 %v349
    %458 = vmatprep.subr.mxu0 %v354
    %459 = vmatpush1.msra.mxu0 %v353
    %460 = vmatprep.subr.mxu0 %v358
    %461 = vmatpush1.msra.mxu0 %v357
    %462 = vmatprep.subr.mxu0 0.0
    %463 = vmatpush1.msra.mxu0 0.0
    %464 = vmatprep.subr.mxu0 0.0
    %465 = vmatpush1.msra.mxu0 0.0
    %466 = vmatprep.subr.mxu0 0.0
    %467 = vmatpush1.msra.mxu0 0.0
    %468 = vmatprep.subr.mxu0 0.0
    %469 = vmatpush1.msra.mxu0 0.0
    %470 = vmatprep.subr.mxu0 0.0
    %471 = vmatpush1.msra.mxu0 0.0
    %472 = vmatprep.subr.mxu0 0.0
    %473 = vmatpush1.msra.mxu0 0.0
    %474 = vmatprep.subr.mxu0 0.0
    %475 = vmatpush1.msra.mxu0 0.0
    %476 = vmatprep.subr.mxu0 0.0
    %477 = vmatpush1.msra.mxu0 0.0
    %478 = vmatprep.subr.mxu0 0.0
    %479 = vmatpush1.msra.mxu0 0.0
    %480 = vmatprep.subr.mxu0 0.0
    %481 = vmatpush1.msra.mxu0 0.0
    %482 = vmatprep.subr.mxu0 0.0
    %483 = vmatpush1.msra.mxu0 0.0
    %484 = vmatprep.subr.mxu0 0.0
    %485 = vmatpush1.msra.mxu0 0.0
    %486 = vmatprep.subr.mxu0 0.0
    %487 = vmatpush1.msra.mxu0 0.0
    %488 = vmatprep.subr.mxu0 0.0
    %489 = vmatpush1.msra.mxu0 0.0
    %490 = vmatprep.subr.mxu0 0.0
    %491 = vmatpush1.msra.mxu0 0.0
    %492 = vmatprep.subr.mxu0 0.0
    %493 = vmatpush1.msra.mxu0 0.0
    %494 = vmatprep.mubr.f32.mxu0 0.0
    %495 = vmatmul.mubr.f32.gmra.mrb[0].mxu0 %v294
    %v496 = vpop.f32.mrb[0].mxu0
    %v497 = vadd.f32 0.0, %v496
    %v498 = vpop.f32.mrb[0].mxu0
    %v499 = vadd.f32 0.0, %v498
    %500 = vdwg.mxu0
    %v501 = vadd.f32 %v290, %v426
    %v502 = vadd.f32 %v291, %v428
    %v503 = vadd.f32 %v292, %v497
    %v504 = vadd.f32 %v293, %v499
    %v505 = vxor.u32 %v501, 2147483648
    %v506 = vxor.u32 %v502, 2147483648
    %v507 = vxor.u32 %v503, 2147483648
    %v508 = vmul.f32 %v505, 1.442695
    %v509 = vpow.pop %v508
    %v510 = vmul.f32 %v506, 1.442695
    %v511 = vpow.pop %v510
    %v512 = vmul.f32 %v507, 1.442695
    %v513 = vpow.pop %v512
    %v514 = vadd.f32 %v509, 1.0
    %v515 = vadd.f32 %v511, 1.0
    %v516 = vadd.f32 %v513, 1.0
    %v517 = vrcp.pop %v514
    %v518 = vmul.f32 1.0, %v517
    %v519 = vrcp.pop %v515
    %v520 = vmul.f32 1.0, %v519
    %v521 = vrcp.pop %v516
    %v522 = vmul.f32 1.0, %v521
    %v523 = vtanh.pop %v504
    %v524 = vld [vmem:[#allocation3] sm:$0xff]
    %v525 = vmul.f32 %v520, %v524
    %v526 = vmul.f32 %v518, %v523
    %v527 = vadd.f32 %v525, %v526
    %v528 = vtanh.pop %v527
    %v529 = vmul.f32 %v522, %v528
    %530 = vst [vmem:[#allocation3] sm:$0xff] %v527
    %531 = vst [vmem:[#allocation2] sm:$0xff] %v529
    %s532 = scalar_lea.vmem [#allocation9], 8
    %533 = vst [vmem:[%s532] sm:$0xff] %v529
    %s534 = scalar_lea.vmem [#allocation4], 64
    %v535 = vld [vmem:[%s534] sm:$0xff]
    %v536 = vld [vmem:[%s534 + $0x8] sm:$0xff]
    %v537 = vld [vmem:[%s534 + $0x10] sm:$0xff]
    %v538 = vld [vmem:[%s534 + $0x18] sm:$0xff]
    %v539 = vld [vmem:[#allocation2] sm:$0xff]
    %v540 = vld [vmem:[#allocation7] sm:$0xff]
    %v541 = vld [vmem:[#allocation7 + $0x8] sm:$0xff]
    %v542 = vld [vmem:[#allocation7 + $0x10] sm:$0xff]
    %v543 = vld [vmem:[#allocation7 + $0x18] sm:$0xff]
    %v544 = vld [vmem:[#allocation7 + $0x20] sm:$0xff]
    %v545 = vld [vmem:[#allocation7 + $0x28] sm:$0xff]
    %v546 = vld [vmem:[#allocation7 + $0x30] sm:$0xff]
    %v547 = vld [vmem:[#allocation7 + $0x38] sm:$0xff]
    %v548 = vld [vmem:[#allocation7 + $0x40] sm:$0xff]
    %v549 = vld [vmem:[#allocation7 + $0x48] sm:$0xff]
    %v550 = vld [vmem:[#allocation7 + $0x50] sm:$0xff]
    %v551 = vld [vmem:[#allocation7 + $0x58] sm:$0xff]
    %v552 = vld [vmem:[#allocation7 + $0x60] sm:$0xff]
    %v553 = vld [vmem:[#allocation7 + $0x68] sm:$0xff]
    %v554 = vld [vmem:[#allocation7 + $0x70] sm:$0xff]
    %v555 = vld [vmem:[#allocation7 + $0x78] sm:$0xff]
    %v556 = vld [vmem:[#allocation7 + $0x80] sm:$0xff]
    %v557 = vld [vmem:[#allocation7 + $0x88] sm:$0xff]
    %v558 = vld [vmem:[#allocation7 + $0x90] sm:$0xff]
    %v559 = vld [vmem:[#allocation7 + $0x98] sm:$0xff]
    %v560 = vld [vmem:[#allocation7 + $0xa0] sm:$0xff]
    %v561 = vld [vmem:[#allocation7 + $0xa8] sm:$0xff]
    %v562 = vld [vmem:[#allocation7 + $0xb0] sm:$0xff]
    %v563 = vld [vmem:[#allocation7 + $0xb8] sm:$0xff]
    %v564 = vld [vmem:[#allocation7 + $0xc0] sm:$0xff]
    %v565 = vld [vmem:[#allocation7 + $0xc8] sm:$0xff]
    %v566 = vld [vmem:[#allocation7 + $0xd0] sm:$0xff]
    %v567 = vld [vmem:[#allocation7 + $0xd8] sm:$0xff]
    %v568 = vld [vmem:[#allocation7 + $0xe0] sm:$0xff]
    %v569 = vld [vmem:[#allocation7 + $0xe8] sm:$0xff]
    %v570 = vld [vmem:[#allocation7 + $0xf0] sm:$0xff]
    %v571 = vld [vmem:[#allocation7 + $0xf8] sm:$0xff]
    %v572 = vld [vmem:[#allocation7 + $0x100] sm:$0xff]
    %v573 = vld [vmem:[#allocation7 + $0x108] sm:$0xff]
    %v574 = vld [vmem:[#allocation7 + $0x110] sm:$0xff]
    %v575 = vld [vmem:[#allocation7 + $0x118] sm:$0xff]
    %v576 = vld [vmem:[#allocation7 + $0x120] sm:$0xff]
    %v577 = vld [vmem:[#allocation7 + $0x128] sm:$0xff]
    %v578 = vld [vmem:[#allocation7 + $0x130] sm:$0xff]
    %v579 = vld [vmem:[#allocation7 + $0x138] sm:$0xff]
    %v580 = vld [vmem:[#allocation7 + $0x140] sm:$0xff]
    %v581 = vld [vmem:[#allocation7 + $0x148] sm:$0xff]
    %v582 = vld [vmem:[#allocation7 + $0x150] sm:$0xff]
    %v583 = vld [vmem:[#allocation7 + $0x158] sm:$0xff]
    %v584 = vld [vmem:[#allocation7 + $0x160] sm:$0xff]
    %v585 = vld [vmem:[#allocation7 + $0x168] sm:$0xff]
    %v586 = vld [vmem:[#allocation7 + $0x170] sm:$0xff]
    %v587 = vld [vmem:[#allocation7 + $0x178] sm:$0xff]
    %v588 = vld [vmem:[#allocation7 + $0x180] sm:$0xff]
    %v589 = vld [vmem:[#allocation7 + $0x188] sm:$0xff]
    %v590 = vld [vmem:[#allocation7 + $0x190] sm:$0xff]
    %v591 = vld [vmem:[#allocation7 + $0x198] sm:$0xff]
    %v592 = vld [vmem:[#allocation7 + $0x1a0] sm:$0xff]
    %v593 = vld [vmem:[#allocation7 + $0x1a8] sm:$0xff]
    %v594 = vld [vmem:[#allocation7 + $0x1b0] sm:$0xff]
    %v595 = vld [vmem:[#allocation7 + $0x1b8] sm:$0xff]
    %v596 = vld [vmem:[#allocation7 + $0x1c0] sm:$0xff]
    %v597 = vld [vmem:[#allocation7 + $0x1c8] sm:$0xff]
    %v598 = vld [vmem:[#allocation7 + $0x1d0] sm:$0xff]
    %v599 = vld [vmem:[#allocation7 + $0x1d8] sm:$0xff]
    %v600 = vld [vmem:[#allocation7 + $0x1e0] sm:$0xff]
    %v601 = vld [vmem:[#allocation7 + $0x1e8] sm:$0xff]
    %v602 = vld [vmem:[#allocation7 + $0x1f0] sm:$0xff]
    %v603 = vld [vmem:[#allocation7 + $0x1f8] sm:$0xff]
    %604 = vmatprep.subr.mxu0 %v541
    %605 = vmatpush1.msra.mxu0 %v540
    %606 = vmatprep.subr.mxu0 %v545
    %607 = vmatpush1.msra.mxu0 %v544
    %608 = vmatprep.subr.mxu0 %v549
    %609 = vmatpush1.msra.mxu0 %v548
    %610 = vmatprep.subr.mxu0 %v553
    %611 = vmatpush1.msra.mxu0 %v552
    %612 = vmatprep.subr.mxu0 %v557
    %613 = vmatpush1.msra.mxu0 %v556
    %614 = vmatprep.subr.mxu0 %v561
    %615 = vmatpush1.msra.mxu0 %v560
    %616 = vmatprep.subr.mxu0 %v565
    %617 = vmatpush1.msra.mxu0 %v564
    %618 = vmatprep.subr.mxu0 %v569
    %619 = vmatpush1.msra.mxu0 %v568
    %620 = vmatprep.subr.mxu0 %v573
    %621 = vmatpush1.msra.mxu0 %v572
    %622 = vmatprep.subr.mxu0 %v577
    %623 = vmatpush1.msra.mxu0 %v576
    %624 = vmatprep.subr.mxu0 %v581
    %625 = vmatpush1.msra.mxu0 %v580
    %626 = vmatprep.subr.mxu0 %v585
    %627 = vmatpush1.msra.mxu0 %v584
    %628 = vmatprep.subr.mxu0 %v589
    %629 = vmatpush1.msra.mxu0 %v588
    %630 = vmatprep.subr.mxu0 %v593
    %631 = vmatpush1.msra.mxu0 %v592
    %632 = vmatprep.subr.mxu0 %v597
    %633 = vmatpush1.msra.mxu0 %v596
    %634 = vmatprep.subr.mxu0 %v601
    %635 = vmatpush1.msra.mxu0 %v600
    %636 = vmatprep.subr.mxu0 0.0
    %637 = vmatpush1.msra.mxu0 0.0
    %638 = vmatprep.subr.mxu0 0.0
    %639 = vmatpush1.msra.mxu0 0.0
    %640 = vmatprep.subr.mxu0 0.0
    %641 = vmatpush1.msra.mxu0 0.0
    %642 = vmatprep.subr.mxu0 0.0
    %643 = vmatpush1.msra.mxu0 0.0
    %644 = vmatprep.subr.mxu0 0.0
    %645 = vmatpush1.msra.mxu0 0.0
    %646 = vmatprep.subr.mxu0 0.0
    %647 = vmatpush1.msra.mxu0 0.0
    %648 = vmatprep.subr.mxu0 0.0
    %649 = vmatpush1.msra.mxu0 0.0
    %650 = vmatprep.subr.mxu0 0.0
    %651 = vmatpush1.msra.mxu0 0.0
    %652 = vmatprep.subr.mxu0 0.0
    %653 = vmatpush1.msra.mxu0 0.0
    %654 = vmatprep.subr.mxu0 0.0
    %655 = vmatpush1.msra.mxu0 0.0
    %656 = vmatprep.subr.mxu0 0.0
    %657 = vmatpush1.msra.mxu0 0.0
    %658 = vmatprep.subr.mxu0 0.0
    %659 = vmatpush1.msra.mxu0 0.0
    %660 = vmatprep.subr.mxu0 0.0
    %661 = vmatpush1.msra.mxu0 0.0
    %662 = vmatprep.subr.mxu0 0.0
    %663 = vmatpush1.msra.mxu0 0.0
    %664 = vmatprep.subr.mxu0 0.0
    %665 = vmatpush1.msra.mxu0 0.0
    %666 = vmatprep.subr.mxu0 0.0
    %667 = vmatpush1.msra.mxu0 0.0
    %668 = vmatprep.mubr.f32.mxu0 0.0
    %669 = vmatmul.mubr.f32.gmra.mrb[0].mxu0 %v539
    %v670 = vpop.f32.mrb[0].mxu0
    %v671 = vadd.f32 0.0, %v670
    %v672 = vpop.f32.mrb[0].mxu0
    %v673 = vadd.f32 0.0, %v672
    %674 = vdwg.mxu0
    %675 = vmatprep.subr.mxu0 %v543
    %676 = vmatpush1.msra.mxu0 %v542
    %677 = vmatprep.subr.mxu0 %v547
    %678 = vmatpush1.msra.mxu0 %v546
    %679 = vmatprep.subr.mxu0 %v551
    %680 = vmatpush1.msra.mxu0 %v550
    %681 = vmatprep.subr.mxu0 %v555
    %682 = vmatpush1.msra.mxu0 %v554
    %683 = vmatprep.subr.mxu0 %v559
    %684 = vmatpush1.msra.mxu0 %v558
    %685 = vmatprep.subr.mxu0 %v563
    %686 = vmatpush1.msra.mxu0 %v562
    %687 = vmatprep.subr.mxu0 %v567
    %688 = vmatpush1.msra.mxu0 %v566
    %689 = vmatprep.subr.mxu0 %v571
    %690 = vmatpush1.msra.mxu0 %v570
    %691 = vmatprep.subr.mxu0 %v575
    %692 = vmatpush1.msra.mxu0 %v574
    %693 = vmatprep.subr.mxu0 %v579
    %694 = vmatpush1.msra.mxu0 %v578
    %695 = vmatprep.subr.mxu0 %v583
    %696 = vmatpush1.msra.mxu0 %v582
    %697 = vmatprep.subr.mxu0 %v587
    %698 = vmatpush1.msra.mxu0 %v586
    %699 = vmatprep.subr.mxu0 %v591
    %700 = vmatpush1.msra.mxu0 %v590
    %701 = vmatprep.subr.mxu0 %v595
    %702 = vmatpush1.msra.mxu0 %v594
    %703 = vmatprep.subr.mxu0 %v599
    %704 = vmatpush1.msra.mxu0 %v598
    %705 = vmatprep.subr.mxu0 %v603
    %706 = vmatpush1.msra.mxu0 %v602
    %707 = vmatprep.subr.mxu0 0.0
    %708 = vmatpush1.msra.mxu0 0.0
    %709 = vmatprep.subr.mxu0 0.0
    %710 = vmatpush1.msra.mxu0 0.0
    %711 = vmatprep.subr.mxu0 0.0
    %712 = vmatpush1.msra.mxu0 0.0
    %713 = vmatprep.subr.mxu0 0.0
    %714 = vmatpush1.msra.mxu0 0.0
    %715 = vmatprep.subr.mxu0 0.0
    %716 = vmatpush1.msra.mxu0 0.0
    %717 = vmatprep.subr.mxu0 0.0
    %718 = vmatpush1.msra.mxu0 0.0
    %719 = vmatprep.subr.mxu0 0.0
    %720 = vmatpush1.msra.mxu0 0.0
    %721 = vmatprep.subr.mxu0 0.0
    %722 = vmatpush1.msra.mxu0 0.0
    %723 = vmatprep.subr.mxu0 0.0
    %724 = vmatpush1.msra.mxu0 0.0
    %725 = vmatprep.subr.mxu0 0.0
    %726 = vmatpush1.msra.mxu0 0.0
    %727 = vmatprep.subr.mxu0 0.0
    %728 = vmatpush1.msra.mxu0 0.0
    %729 = vmatprep.subr.mxu0 0.0
    %730 = vmatpush1.msra.mxu0 0.0
    %731 = vmatprep.subr.mxu0 0.0
    %732 = vmatpush1.msra.mxu0 0.0
    %733 = vmatprep.subr.mxu0 0.0
    %734 = vmatpush1.msra.mxu0 0.0
    %735 = vmatprep.subr.mxu0 0.0
    %736 = vmatpush1.msra.mxu0 0.0
    %737 = vmatprep.subr.mxu0 0.0
    %738 = vmatpush1.msra.mxu0 0.0
    %739 = vmatprep.mubr.f32.mxu0 0.0
    %740 = vmatmul.mubr.f32.gmra.mrb[0].mxu0 %v539
    %v741 = vpop.f32.mrb[0].mxu0
    %v742 = vadd.f32 0.0, %v741
    %v743 = vpop.f32.mrb[0].mxu0
    %v744 = vadd.f32 0.0, %v743
    %745 = vdwg.mxu0
    %v746 = vadd.f32 %v535, %v671
    %v747 = vadd.f32 %v536, %v673
    %v748 = vadd.f32 %v537, %v742
    %v749 = vadd.f32 %v538, %v744
    %v750 = vxor.u32 %v746, 2147483648
    %v751 = vxor.u32 %v747, 2147483648
    %v752 = vxor.u32 %v748, 2147483648
    %v753 = vmul.f32 %v750, 1.442695
    %v754 = vpow.pop %v753
    %v755 = vmul.f32 %v751, 1.442695
    %v756 = vpow.pop %v755
    %v757 = vmul.f32 %v752, 1.442695
    %v758 = vpow.pop %v757
    %v759 = vadd.f32 %v754, 1.0
    %v760 = vadd.f32 %v756, 1.0
    %v761 = vadd.f32 %v758, 1.0
    %v762 = vrcp.pop %v759
    %v763 = vmul.f32 1.0, %v762
    %v764 = vrcp.pop %v760
    %v765 = vmul.f32 1.0, %v764
    %v766 = vrcp.pop %v761
    %v767 = vmul.f32 1.0, %v766
    %v768 = vtanh.pop %v749
    %v769 = vld [vmem:[#allocation3] sm:$0xff]
    %v770 = vmul.f32 %v765, %v769
    %v771 = vmul.f32 %v763, %v768
    %v772 = vadd.f32 %v770, %v771
    %v773 = vtanh.pop %v772
    %v774 = vmul.f32 %v767, %v773
    %775 = vst [vmem:[#allocation3] sm:$0xff] %v772
    %776 = vst [vmem:[#allocation2] sm:$0xff] %v774
    %s777 = scalar_lea.vmem [#allocation9], 16
    %778 = vst [vmem:[%s777] sm:$0xff] %v774
    %s779 = scalar_lea.vmem [#allocation4], 96
    %v780 = vld [vmem:[%s779] sm:$0xff]
    %v781 = vld [vmem:[%s779 + $0x8] sm:$0xff]
    %v782 = vld [vmem:[%s779 + $0x10] sm:$0xff]
    %v783 = vld [vmem:[%s779 + $0x18] sm:$0xff]
    %v784 = vld [vmem:[#allocation2] sm:$0xff]
    %v785 = vld [vmem:[#allocation7] sm:$0xff]
    %v786 = vld [vmem:[#allocation7 + $0x8] sm:$0xff]
    %v787 = vld [vmem:[#allocation7 + $0x10] sm:$0xff]
    %v788 = vld [vmem:[#allocation7 + $0x18] sm:$0xff]
    %v789 = vld [vmem:[#allocation7 + $0x20] sm:$0xff]
    %v790 = vld [vmem:[#allocation7 + $0x28] sm:$0xff]
    %v791 = vld [vmem:[#allocation7 + $0x30] sm:$0xff]
    %v792 = vld [vmem:[#allocation7 + $0x38] sm:$0xff]
    %v793 = vld [vmem:[#allocation7 + $0x40] sm:$0xff]
    %v794 = vld [vmem:[#allocation7 + $0x48] sm:$0xff]
    %v795 = vld [vmem:[#allocation7 + $0x50] sm:$0xff]
    %v796 = vld [vmem:[#allocation7 + $0x58] sm:$0xff]
    %v797 = vld [vmem:[#allocation7 + $0x60] sm:$0xff]
    %v798 = vld [vmem:[#allocation7 + $0x68] sm:$0xff]
    %v799 = vld [vmem:[#allocation7 + $0x70] sm:$0xff]
    %v800 = vld [vmem:[#allocation7 + $0x78] sm:$0xff]
    %v801 = vld [vmem:[#allocation7 + $0x80] sm:$0xff]
    %v802 = vld [vmem:[#allocation7 + $0x88] sm:$0xff]
    %v803 = vld [vmem:[#allocation7 + $0x90] sm:$0xff]
    %v804 = vld [vmem:[#allocation7 + $0x98] sm:$0xff]
    %v805 = vld [vmem:[#allocation7 + $0xa0] sm:$0xff]
    %v806 = vld [vmem:[#allocation7 + $0xa8] sm:$0xff]
    %v807 = vld [vmem:[#allocation7 + $0xb0] sm:$0xff]
    %v808 = vld [vmem:[#allocation7 + $0xb8] sm:$0xff]
    %v809 = vld [vmem:[#allocation7 + $0xc0] sm:$0xff]
    %v810 = vld [vmem:[#allocation7 + $0xc8] sm:$0xff]
    %v811 = vld [vmem:[#allocation7 + $0xd0] sm:$0xff]
    %v812 = vld [vmem:[#allocation7 + $0xd8] sm:$0xff]
    %v813 = vld [vmem:[#allocation7 + $0xe0] sm:$0xff]
    %v814 = vld [vmem:[#allocation7 + $0xe8] sm:$0xff]
    %v815 = vld [vmem:[#allocation7 + $0xf0] sm:$0xff]
    %v816 = vld [vmem:[#allocation7 + $0xf8] sm:$0xff]
    %v817 = vld [vmem:[#allocation7 + $0x100] sm:$0xff]
    %v818 = vld [vmem:[#allocation7 + $0x108] sm:$0xff]
    %v819 = vld [vmem:[#allocation7 + $0x110] sm:$0xff]
    %v820 = vld [vmem:[#allocation7 + $0x118] sm:$0xff]
    %v821 = vld [vmem:[#allocation7 + $0x120] sm:$0xff]
    %v822 = vld [vmem:[#allocation7 + $0x128] sm:$0xff]
    %v823 = vld [vmem:[#allocation7 + $0x130] sm:$0xff]
    %v824 = vld [vmem:[#allocation7 + $0x138] sm:$0xff]
    %v825 = vld [vmem:[#allocation7 + $0x140] sm:$0xff]
    %v826 = vld [vmem:[#allocation7 + $0x148] sm:$0xff]
    %v827 = vld [vmem:[#allocation7 + $0x150] sm:$0xff]
    %v828 = vld [vmem:[#allocation7 + $0x158] sm:$0xff]
    %v829 = vld [vmem:[#allocation7 + $0x160] sm:$0xff]
    %v830 = vld [vmem:[#allocation7 + $0x168] sm:$0xff]
    %v831 = vld [vmem:[#allocation7 + $0x170] sm:$0xff]
    %v832 = vld [vmem:[#allocation7 + $0x178] sm:$0xff]
    %v833 = vld [vmem:[#allocation7 + $0x180] sm:$0xff]
    %v834 = vld [vmem:[#allocation7 + $0x188] sm:$0xff]
    %v835 = vld [vmem:[#allocation7 + $0x190] sm:$0xff]
    %v836 = vld [vmem:[#allocation7 + $0x198] sm:$0xff]
    %v837 = vld [vmem:[#allocation7 + $0x1a0] sm:$0xff]
    %v838 = vld [vmem:[#allocation7 + $0x1a8] sm:$0xff]
    %v839 = vld [vmem:[#allocation7 + $0x1b0] sm:$0xff]
    %v840 = vld [vmem:[#allocation7 + $0x1b8] sm:$0xff]
    %v841 = vld [vmem:[#allocation7 + $0x1c0] sm:$0xff]
    %v842 = vld [vmem:[#allocation7 + $0x1c8] sm:$0xff]
    %v843 = vld [vmem:[#allocation7 + $0x1d0] sm:$0xff]
    %v844 = vld [vmem:[#allocation7 + $0x1d8] sm:$0xff]
    %v845 = vld [vmem:[#allocation7 + $0x1e0] sm:$0xff]
    %v846 = vld [vmem:[#allocation7 + $0x1e8] sm:$0xff]
    %v847 = vld [vmem:[#allocation7 + $0x1f0] sm:$0xff]
    %v848 = vld [vmem:[#allocation7 + $0x1f8] sm:$0xff]
    %849 = vmatprep.subr.mxu0 %v786
    %850 = vmatpush1.msra.mxu0 %v785
    %851 = vmatprep.subr.mxu0 %v790
    %852 = vmatpush1.msra.mxu0 %v789
    %853 = vmatprep.subr.mxu0 %v794
    %854 = vmatpush1.msra.mxu0 %v793
    %855 = vmatprep.subr.mxu0 %v798
    %856 = vmatpush1.msra.mxu0 %v797
    %857 = vmatprep.subr.mxu0 %v802
    %858 = vmatpush1.msra.mxu0 %v801
    %859 = vmatprep.subr.mxu0 %v806
    %860 = vmatpush1.msra.mxu0 %v805
    %861 = vmatprep.subr.mxu0 %v810
    %862 = vmatpush1.msra.mxu0 %v809
    %863 = vmatprep.subr.mxu0 %v814
    %864 = vmatpush1.msra.mxu0 %v813
    %865 = vmatprep.subr.mxu0 %v818
    %866 = vmatpush1.msra.mxu0 %v817
    %867 = vmatprep.subr.mxu0 %v822
    %868 = vmatpush1.msra.mxu0 %v821
    %869 = vmatprep.subr.mxu0 %v826
    %870 = vmatpush1.msra.mxu0 %v825
    %871 = vmatprep.subr.mxu0 %v830
    %872 = vmatpush1.msra.mxu0 %v829
    %873 = vmatprep.subr.mxu0 %v834
    %874 = vmatpush1.msra.mxu0 %v833
    %875 = vmatprep.subr.mxu0 %v838
    %876 = vmatpush1.msra.mxu0 %v837
    %877 = vmatprep.subr.mxu0 %v842
    %878 = vmatpush1.msra.mxu0 %v841
    %879 = vmatprep.subr.mxu0 %v846
    %880 = vmatpush1.msra.mxu0 %v845
    %881 = vmatprep.subr.mxu0 0.0
    %882 = vmatpush1.msra.mxu0 0.0
    %883 = vmatprep.subr.mxu0 0.0
    %884 = vmatpush1.msra.mxu0 0.0
    %885 = vmatprep.subr.mxu0 0.0
    %886 = vmatpush1.msra.mxu0 0.0
    %887 = vmatprep.subr.mxu0 0.0
    %888 = vmatpush1.msra.mxu0 0.0
    %889 = vmatprep.subr.mxu0 0.0
    %890 = vmatpush1.msra.mxu0 0.0
    %891 = vmatprep.subr.mxu0 0.0
    %892 = vmatpush1.msra.mxu0 0.0
    %893 = vmatprep.subr.mxu0 0.0
    %894 = vmatpush1.msra.mxu0 0.0
    %895 = vmatprep.subr.mxu0 0.0
    %896 = vmatpush1.msra.mxu0 0.0
    %897 = vmatprep.subr.mxu0 0.0
    %898 = vmatpush1.msra.mxu0 0.0
    %899 = vmatprep.subr.mxu0 0.0
    %900 = vmatpush1.msra.mxu0 0.0
    %901 = vmatprep.subr.mxu0 0.0
    %902 = vmatpush1.msra.mxu0 0.0
    %903 = vmatprep.subr.mxu0 0.0
    %904 = vmatpush1.msra.mxu0 0.0
    %905 = vmatprep.subr.mxu0 0.0
    %906 = vmatpush1.msra.mxu0 0.0
    %907 = vmatprep.subr.mxu0 0.0
    %908 = vmatpush1.msra.mxu0 0.0
    %909 = vmatprep.subr.mxu0 0.0
    %910 = vmatpush1.msra.mxu0 0.0
    %911 = vmatprep.subr.mxu0 0.0
    %912 = vmatpush1.msra.mxu0 0.0
    %913 = vmatprep.mubr.f32.mxu0 0.0
    %914 = vmatmul.mubr.f32.gmra.mrb[0].mxu0 %v784
    %v915 = vpop.f32.mrb[0].mxu0
    %v916 = vadd.f32 0.0, %v915
    %v917 = vpop.f32.mrb[0].mxu0
    %v918 = vadd.f32 0.0, %v917
    %919 = vdwg.mxu0
    %920 = vmatprep.subr.mxu0 %v788
    %921 = vmatpush1.msra.mxu0 %v787
    %922 = vmatprep.subr.mxu0 %v792
    %923 = vmatpush1.msra.mxu0 %v791
    %924 = vmatprep.subr.mxu0 %v796
    %925 = vmatpush1.msra.mxu0 %v795
    %926 = vmatprep.subr.mxu0 %v800
    %927 = vmatpush1.msra.mxu0 %v799
    %928 = vmatprep.subr.mxu0 %v804
    %929 = vmatpush1.msra.mxu0 %v803
    %930 = vmatprep.subr.mxu0 %v808
    %931 = vmatpush1.msra.mxu0 %v807
    %932 = vmatprep.subr.mxu0 %v812
    %933 = vmatpush1.msra.mxu0 %v811
    %934 = vmatprep.subr.mxu0 %v816
    %935 = vmatpush1.msra.mxu0 %v815
    %936 = vmatprep.subr.mxu0 %v820
    %937 = vmatpush1.msra.mxu0 %v819
    %938 = vmatprep.subr.mxu0 %v824
    %939 = vmatpush1.msra.mxu0 %v823
    %940 = vmatprep.subr.mxu0 %v828
    %941 = vmatpush1.msra.mxu0 %v827
    %942 = vmatprep.subr.mxu0 %v832
    %943 = vmatpush1.msra.mxu0 %v831
    %944 = vmatprep.subr.mxu0 %v836
    %945 = vmatpush1.msra.mxu0 %v835
    %946 = vmatprep.subr.mxu0 %v840
    %947 = vmatpush1.msra.mxu0 %v839
    %948 = vmatprep.subr.mxu0 %v844
    %949 = vmatpush1.msra.mxu0 %v843
    %950 = vmatprep.subr.mxu0 %v848
    %951 = vmatpush1.msra.mxu0 %v847
    %952 = vmatprep.subr.mxu0 0.0
    %953 = vmatpush1.msra.mxu0 0.0
    %954 = vmatprep.subr.mxu0 0.0
    %955 = vmatpush1.msra.mxu0 0.0
    %956 = vmatprep.subr.mxu0 0.0
    %957 = vmatpush1.msra.mxu0 0.0
    %958 = vmatprep.subr.mxu0 0.0
    %959 = vmatpush1.msra.mxu0 0.0
    %960 = vmatprep.subr.mxu0 0.0
    %961 = vmatpush1.msra.mxu0 0.0
    %962 = vmatprep.subr.mxu0 0.0
    %963 = vmatpush1.msra.mxu0 0.0
    %964 = vmatprep.subr.mxu0 0.0
    %965 = vmatpush1.msra.mxu0 0.0
    %966 = vmatprep.subr.mxu0 0.0
    %967 = vmatpush1.msra.mxu0 0.0
    %968 = vmatprep.subr.mxu0 0.0
    %969 = vmatpush1.msra.mxu0 0.0
    %970 = vmatprep.subr.mxu0 0.0
    %971 = vmatpush1.msra.mxu0 0.0
    %972 = vmatprep.subr.mxu0 0.0
    %973 = vmatpush1.msra.mxu0 0.0
    %974 = vmatprep.subr.mxu0 0.0
    %975 = vmatpush1.msra.mxu0 0.0
    %976 = vmatprep.subr.mxu0 0.0
    %977 = vmatpush1.msra.mxu0 0.0
    %978 = vmatprep.subr.mxu0 0.0
    %979 = vmatpush1.msra.mxu0 0.0
    %980 = vmatprep.subr.mxu0 0.0
    %981 = vmatpush1.msra.mxu0 0.0
    %982 = vmatprep.subr.mxu0 0.0
    %983 = vmatpush1.msra.mxu0 0.0
    %984 = vmatprep.mubr.f32.mxu0 0.0
    %985 = vmatmul.mubr.f32.gmra.mrb[0].mxu0 %v784
    %v986 = vpop.f32.mrb[0].mxu0
    %v987 = vadd.f32 0.0, %v986
    %v988 = vpop.f32.mrb[0].mxu0
    %v989 = vadd.f32 0.0, %v988
    %990 = vdwg.mxu0
    %v991 = vadd.f32 %v780, %v916
    %v992 = vadd.f32 %v781, %v918
    %v993 = vadd.f32 %v782, %v987
    %v994 = vadd.f32 %v783, %v989
    %v995 = vxor.u32 %v991, 2147483648
    %v996 = vxor.u32 %v992, 2147483648
    %v997 = vxor.u32 %v993, 2147483648
    %v998 = vmul.f32 %v995, 1.442695
    %v999 = vpow.pop %v998
    %v1000 = vmul.f32 %v996, 1.442695
    %v1001 = vpow.pop %v1000
    %v1002 = vmul.f32 %v997, 1.442695
    %v1003 = vpow.pop %v1002
    %v1004 = vadd.f32 %v999, 1.0
    %v1005 = vadd.f32 %v1001, 1.0
    %v1006 = vadd.f32 %v1003, 1.0
    %v1007 = vrcp.pop %v1004
    %v1008 = vmul.f32 1.0, %v1007
    %v1009 = vrcp.pop %v1005
    %v1010 = vmul.f32 1.0, %v1009
    %v1011 = vrcp.pop %v1006
    %v1012 = vmul.f32 1.0, %v1011
    %v1013 = vtanh.pop %v994
    %v1014 = vld [vmem:[#allocation3] sm:$0xff]
    %v1015 = vmul.f32 %v1010, %v1014
    %v1016 = vmul.f32 %v1008, %v1013
    %v1017 = vadd.f32 %v1015, %v1016
    %v1018 = vtanh.pop %v1017
    %v1019 = vmul.f32 %v1012, %v1018
    %1020 = vst [vmem:[#allocation3] sm:$0xff] %v1017
    %1021 = vst [vmem:[#allocation2] sm:$0xff] %v1019
    %s1022 = scalar_lea.vmem [#allocation9], 24
    %1023 = vst [vmem:[%s1022] sm:$0xff] %v1019
    %s1024 = scalar_lea.vmem [#allocation4], 128
    %v1025 = vld [vmem:[%s1024] sm:$0xff]
    %v1026 = vld [vmem:[%s1024 + $0x8] sm:$0xff]
    %v1027 = vld [vmem:[%s1024 + $0x10] sm:$0xff]
    %v1028 = vld [vmem:[%s1024 + $0x18] sm:$0xff]
    %v1029 = vld [vmem:[#allocation2] sm:$0xff]
    %v1030 = vld [vmem:[#allocation7] sm:$0xff]
    %v1031 = vld [vmem:[#allocation7 + $0x8] sm:$0xff]
    %v1032 = vld [vmem:[#allocation7 + $0x10] sm:$0xff]
    %v1033 = vld [vmem:[#allocation7 + $0x18] sm:$0xff]
    %v1034 = vld [vmem:[#allocation7 + $0x20] sm:$0xff]
    %v1035 = vld [vmem:[#allocation7 + $0x28] sm:$0xff]
    %v1036 = vld [vmem:[#allocation7 + $0x30] sm:$0xff]
    %v1037 = vld [vmem:[#allocation7 + $0x38] sm:$0xff]
    %v1038 = vld [vmem:[#allocation7 + $0x40] sm:$0xff]
    %v1039 = vld [vmem:[#allocation7 + $0x48] sm:$0xff]
    %v1040 = vld [vmem:[#allocation7 + $0x50] sm:$0xff]
    %v1041 = vld [vmem:[#allocation7 + $0x58] sm:$0xff]
    %v1042 = vld [vmem:[#allocation7 + $0x60] sm:$0xff]
    %v1043 = vld [vmem:[#allocation7 + $0x68] sm:$0xff]
    %v1044 = vld [vmem:[#allocation7 + $0x70] sm:$0xff]
    %v1045 = vld [vmem:[#allocation7 + $0x78] sm:$0xff]
    %v1046 = vld [vmem:[#allocation7 + $0x80] sm:$0xff]
    %v1047 = vld [vmem:[#allocation7 + $0x88] sm:$0xff]
    %v1048 = vld [vmem:[#allocation7 + $0x90] sm:$0xff]
    %v1049 = vld [vmem:[#allocation7 + $0x98] sm:$0xff]
    %v1050 = vld [vmem:[#allocation7 + $0xa0] sm:$0xff]
    %v1051 = vld [vmem:[#allocation7 + $0xa8] sm:$0xff]
    %v1052 = vld [vmem:[#allocation7 + $0xb0] sm:$0xff]
    %v1053 = vld [vmem:[#allocation7 + $0xb8] sm:$0xff]
    %v1054 = vld [vmem:[#allocation7 + $0xc0] sm:$0xff]
    %v1055 = vld [vmem:[#allocation7 + $0xc8] sm:$0xff]
    %v1056 = vld [vmem:[#allocation7 + $0xd0] sm:$0xff]
    %v1057 = vld [vmem:[#allocation7 + $0xd8] sm:$0xff]
    %v1058 = vld [vmem:[#allocation7 + $0xe0] sm:$0xff]
    %v1059 = vld [vmem:[#allocation7 + $0xe8] sm:$0xff]
    %v1060 = vld [vmem:[#allocation7 + $0xf0] sm:$0xff]
    %v1061 = vld [vmem:[#allocation7 + $0xf8] sm:$0xff]
    %v1062 = vld [vmem:[#allocation7 + $0x100] sm:$0xff]
    %v1063 = vld [vmem:[#allocation7 + $0x108] sm:$0xff]
    %v1064 = vld [vmem:[#allocation7 + $0x110] sm:$0xff]
    %v1065 = vld [vmem:[#allocation7 + $0x118] sm:$0xff]
    %v1066 = vld [vmem:[#allocation7 + $0x120] sm:$0xff]
    %v1067 = vld [vmem:[#allocation7 + $0x128] sm:$0xff]
    %v1068 = vld [vmem:[#allocation7 + $0x130] sm:$0xff]
    %v1069 = vld [vmem:[#allocation7 + $0x138] sm:$0xff]
    %v1070 = vld [vmem:[#allocation7 + $0x140] sm:$0xff]
    %v1071 = vld [vmem:[#allocation7 + $0x148] sm:$0xff]
    %v1072 = vld [vmem:[#allocation7 + $0x150] sm:$0xff]
    %v1073 = vld [vmem:[#allocation7 + $0x158] sm:$0xff]
    %v1074 = vld [vmem:[#allocation7 + $0x160] sm:$0xff]
    %v1075 = vld [vmem:[#allocation7 + $0x168] sm:$0xff]
    %v1076 = vld [vmem:[#allocation7 + $0x170] sm:$0xff]
    %v1077 = vld [vmem:[#allocation7 + $0x178] sm:$0xff]
    %v1078 = vld [vmem:[#allocation7 + $0x180] sm:$0xff]
    %v1079 = vld [vmem:[#allocation7 + $0x188] sm:$0xff]
    %v1080 = vld [vmem:[#allocation7 + $0x190] sm:$0xff]
    %v1081 = vld [vmem:[#allocation7 + $0x198] sm:$0xff]
    %v1082 = vld [vmem:[#allocation7 + $0x1a0] sm:$0xff]
    %v1083 = vld [vmem:[#allocation7 + $0x1a8] sm:$0xff]
    %v1084 = vld [vmem:[#allocation7 + $0x1b0] sm:$0xff]
    %v1085 = vld [vmem:[#allocation7 + $0x1b8] sm:$0xff]
    %v1086 = vld [vmem:[#allocation7 + $0x1c0] sm:$0xff]
    %v1087 = vld [vmem:[#allocation7 + $0x1c8] sm:$0xff]
    %v1088 = vld [vmem:[#allocation7 + $0x1d0] sm:$0xff]
    %v1089 = vld [vmem:[#allocation7 + $0x1d8] sm:$0xff]
    %v1090 = vld [vmem:[#allocation7 + $0x1e0] sm:$0xff]
    %v1091 = vld [vmem:[#allocation7 + $0x1e8] sm:$0xff]
    %v1092 = vld [vmem:[#allocation7 + $0x1f0] sm:$0xff]
    %v1093 = vld [vmem:[#allocation7 + $0x1f8] sm:$0xff]
    %1094 = vmatprep.subr.mxu0 %v1031
    %1095 = vmatpush1.msra.mxu0 %v1030
    %1096 = vmatprep.subr.mxu0 %v1035
    %1097 = vmatpush1.msra.mxu0 %v1034
    %1098 = vmatprep.subr.mxu0 %v1039
    %1099 = vmatpush1.msra.mxu0 %v1038
    %1100 = vmatprep.subr.mxu0 %v1043
    %1101 = vmatpush1.msra.mxu0 %v1042
    %1102 = vmatprep.subr.mxu0 %v1047
    %1103 = vmatpush1.msra.mxu0 %v1046
    %1104 = vmatprep.subr.mxu0 %v1051
    %1105 = vmatpush1.msra.mxu0 %v1050
    %1106 = vmatprep.subr.mxu0 %v1055
    %1107 = vmatpush1.msra.mxu0 %v1054
    %1108 = vmatprep.subr.mxu0 %v1059
    %1109 = vmatpush1.msra.mxu0 %v1058
    %1110 = vmatprep.subr.mxu0 %v1063
    %1111 = vmatpush1.msra.mxu0 %v1062
    %1112 = vmatprep.subr.mxu0 %v1067
    %1113 = vmatpush1.msra.mxu0 %v1066
    %1114 = vmatprep.subr.mxu0 %v1071
    %1115 = vmatpush1.msra.mxu0 %v1070
    %1116 = vmatprep.subr.mxu0 %v1075
    %1117 = vmatpush1.msra.mxu0 %v1074
    %1118 = vmatprep.subr.mxu0 %v1079
    %1119 = vmatpush1.msra.mxu0 %v1078
    %1120 = vmatprep.subr.mxu0 %v1083
    %1121 = vmatpush1.msra.mxu0 %v1082
    %1122 = vmatprep.subr.mxu0 %v1087
    %1123 = vmatpush1.msra.mxu0 %v1086
    %1124 = vmatprep.subr.mxu0 %v1091
    %1125 = vmatpush1.msra.mxu0 %v1090
    %1126 = vmatprep.subr.mxu0 0.0
    %1127 = vmatpush1.msra.mxu0 0.0
    %1128 = vmatprep.subr.mxu0 0.0
    %1129 = vmatpush1.msra.mxu0 0.0
    %1130 = vmatprep.subr.mxu0 0.0
    %1131 = vmatpush1.msra.mxu0 0.0
    %1132 = vmatprep.subr.mxu0 0.0
    %1133 = vmatpush1.msra.mxu0 0.0
    %1134 = vmatprep.subr.mxu0 0.0
    %1135 = vmatpush1.msra.mxu0 0.0
    %1136 = vmatprep.subr.mxu0 0.0
    %1137 = vmatpush1.msra.mxu0 0.0
    %1138 = vmatprep.subr.mxu0 0.0
    %1139 = vmatpush1.msra.mxu0 0.0
    %1140 = vmatprep.subr.mxu0 0.0
    %1141 = vmatpush1.msra.mxu0 0.0
    %1142 = vmatprep.subr.mxu0 0.0
    %1143 = vmatpush1.msra.mxu0 0.0
    %1144 = vmatprep.subr.mxu0 0.0
    %1145 = vmatpush1.msra.mxu0 0.0
    %1146 = vmatprep.subr.mxu0 0.0
    %1147 = vmatpush1.msra.mxu0 0.0
    %1148 = vmatprep.subr.mxu0 0.0
    %1149 = vmatpush1.msra.mxu0 0.0
    %1150 = vmatprep.subr.mxu0 0.0
    %1151 = vmatpush1.msra.mxu0 0.0
    %1152 = vmatprep.subr.mxu0 0.0
    %1153 = vmatpush1.msra.mxu0 0.0
    %1154 = vmatprep.subr.mxu0 0.0
    %1155 = vmatpush1.msra.mxu0 0.0
    %1156 = vmatprep.subr.mxu0 0.0
    %1157 = vmatpush1.msra.mxu0 0.0
    %1158 = vmatprep.mubr.f32.mxu0 0.0
    %1159 = vmatmul.mubr.f32.gmra.mrb[0].mxu0 %v1029
    %v1160 = vpop.f32.mrb[0].mxu0
    %v1161 = vadd.f32 0.0, %v1160
    %v1162 = vpop.f32.mrb[0].mxu0
    %v1163 = vadd.f32 0.0, %v1162
    %1164 = vdwg.mxu0
    %1165 = vmatprep.subr.mxu0 %v1033
    %1166 = vmatpush1.msra.mxu0 %v1032
    %1167 = vmatprep.subr.mxu0 %v1037
    %1168 = vmatpush1.msra.mxu0 %v1036
    %1169 = vmatprep.subr.mxu0 %v1041
    %1170 = vmatpush1.msra.mxu0 %v1040
    %1171 = vmatprep.subr.mxu0 %v1045
    %1172 = vmatpush1.msra.mxu0 %v1044
    %1173 = vmatprep.subr.mxu0 %v1049
    %1174 = vmatpush1.msra.mxu0 %v1048
    %1175 = vmatprep.subr.mxu0 %v1053
    %1176 = vmatpush1.msra.mxu0 %v1052
    %1177 = vmatprep.subr.mxu0 %v1057
    %1178 = vmatpush1.msra.mxu0 %v1056
    %1179 = vmatprep.subr.mxu0 %v1061
    %1180 = vmatpush1.msra.mxu0 %v1060
    %1181 = vmatprep.subr.mxu0 %v1065
    %1182 = vmatpush1.msra.mxu0 %v1064
    %1183 = vmatprep.subr.mxu0 %v1069
    %1184 = vmatpush1.msra.mxu0 %v1068
    %1185 = vmatprep.subr.mxu0 %v1073
    %1186 = vmatpush1.msra.mxu0 %v1072
    %1187 = vmatprep.subr.mxu0 %v1077
    %1188 = vmatpush1.msra.mxu0 %v1076
    %1189 = vmatprep.subr.mxu0 %v1081
    %1190 = vmatpush1.msra.mxu0 %v1080
    %1191 = vmatprep.subr.mxu0 %v1085
    %1192 = vmatpush1.msra.mxu0 %v1084
    %1193 = vmatprep.subr.mxu0 %v1089
    %1194 = vmatpush1.msra.mxu0 %v1088
    %1195 = vmatprep.subr.mxu0 %v1093
    %1196 = vmatpush1.msra.mxu0 %v1092
    %1197 = vmatprep.subr.mxu0 0.0
    %1198 = vmatpush1.msra.mxu0 0.0
    %1199 = vmatprep.subr.mxu0 0.0
    %1200 = vmatpush1.msra.mxu0 0.0
    %1201 = vmatprep.subr.mxu0 0.0
    %1202 = vmatpush1.msra.mxu0 0.0
    %1203 = vmatprep.subr.mxu0 0.0
    %1204 = vmatpush1.msra.mxu0 0.0
    %1205 = vmatprep.subr.mxu0 0.0
    %1206 = vmatpush1.msra.mxu0 0.0
    %1207 = vmatprep.subr.mxu0 0.0
    %1208 = vmatpush1.msra.mxu0 0.0
    %1209 = vmatprep.subr.mxu0 0.0
    %1210 = vmatpush1.msra.mxu0 0.0
    %1211 = vmatprep.subr.mxu0 0.0
    %1212 = vmatpush1.msra.mxu0 0.0
    %1213 = vmatprep.subr.mxu0 0.0
    %1214 = vmatpush1.msra.mxu0 0.0
    %1215 = vmatprep.subr.mxu0 0.0
    %1216 = vmatpush1.msra.mxu0 0.0
    %1217 = vmatprep.subr.mxu0 0.0
    %1218 = vmatpush1.msra.mxu0 0.0
    %1219 = vmatprep.subr.mxu0 0.0
    %1220 = vmatpush1.msra.mxu0 0.0
    %1221 = vmatprep.subr.mxu0 0.0
    %1222 = vmatpush1.msra.mxu0 0.0
    %1223 = vmatprep.subr.mxu0 0.0
    %1224 = vmatpush1.msra.mxu0 0.0
    %1225 = vmatprep.subr.mxu0 0.0
    %1226 = vmatpush1.msra.mxu0 0.0
    %1227 = vmatprep.subr.mxu0 0.0
    %1228 = vmatpush1.msra.mxu0 0.0
    %1229 = vmatprep.mubr.f32.mxu0 0.0
    %1230 = vmatmul.mubr.f32.gmra.mrb[0].mxu0 %v1029
    %v1231 = vpop.f32.mrb[0].mxu0
    %v1232 = vadd.f32 0.0, %v1231
    %v1233 = vpop.f32.mrb[0].mxu0
    %v1234 = vadd.f32 0.0, %v1233
    %1235 = vdwg.mxu0
    %v1236 = vadd.f32 %v1025, %v1161
    %v1237 = vadd.f32 %v1026, %v1163
    %v1238 = vadd.f32 %v1027, %v1232
    %v1239 = vadd.f32 %v1028, %v1234
    %v1240 = vxor.u32 %v1236, 2147483648
    %v1241 = vxor.u32 %v1237, 2147483648
    %v1242 = vxor.u32 %v1238, 2147483648
    %v1243 = vmul.f32 %v1240, 1.442695
    %v1244 = vpow.pop %v1243
    %v1245 = vmul.f32 %v1241, 1.442695
    %v1246 = vpow.pop %v1245
    %v1247 = vmul.f32 %v1242, 1.442695
    %v1248 = vpow.pop %v1247
    %v1249 = vadd.f32 %v1244, 1.0
    %v1250 = vadd.f32 %v1246, 1.0
    %v1251 = vadd.f32 %v1248, 1.0
    %v1252 = vrcp.pop %v1249
    %v1253 = vmul.f32 1.0, %v1252
    %v1254 = vrcp.pop %v1250
    %v1255 = vmul.f32 1.0, %v1254
    %v1256 = vrcp.pop %v1251
    %v1257 = vmul.f32 1.0, %v1256
    %v1258 = vtanh.pop %v1239
    %v1259 = vld [vmem:[#allocation3] sm:$0xff]
    %v1260 = vmul.f32 %v1255, %v1259
    %v1261 = vmul.f32 %v1253, %v1258
    %v1262 = vadd.f32 %v1260, %v1261
    %v1263 = vtanh.pop %v1262
    %v1264 = vmul.f32 %v1257, %v1263
    %1265 = vst [vmem:[#allocation3] sm:$0xff] %v1262
    %1266 = vst [vmem:[#allocation2] sm:$0xff] %v1264
    %s1267 = scalar_lea.vmem [#allocation9], 32
    %1268 = vst [vmem:[%s1267] sm:$0xff] %v1264
    %s1269 = scalar_lea.vmem [#allocation4], 160
    %v1270 = vld [vmem:[%s1269] sm:$0xff]
    %v1271 = vld [vmem:[%s1269 + $0x8] sm:$0xff]
    %v1272 = vld [vmem:[%s1269 + $0x10] sm:$0xff]
    %v1273 = vld [vmem:[%s1269 + $0x18] sm:$0xff]
    %v1274 = vld [vmem:[#allocation2] sm:$0xff]
    %v1275 = vld [vmem:[#allocation7] sm:$0xff]
    %v1276 = vld [vmem:[#allocation7 + $0x8] sm:$0xff]
    %v1277 = vld [vmem:[#allocation7 + $0x10] sm:$0xff]
    %v1278 = vld [vmem:[#allocation7 + $0x18] sm:$0xff]
    %v1279 = vld [vmem:[#allocation7 + $0x20] sm:$0xff]
    %v1280 = vld [vmem:[#allocation7 + $0x28] sm:$0xff]
    %v1281 = vld [vmem:[#allocation7 + $0x30] sm:$0xff]
    %v1282 = vld [vmem:[#allocation7 + $0x38] sm:$0xff]
    %v1283 = vld [vmem:[#allocation7 + $0x40] sm:$0xff]
    %v1284 = vld [vmem:[#allocation7 + $0x48] sm:$0xff]
    %v1285 = vld [vmem:[#allocation7 + $0x50] sm:$0xff]
    %v1286 = vld [vmem:[#allocation7 + $0x58] sm:$0xff]
    %v1287 = vld [vmem:[#allocation7 + $0x60] sm:$0xff]
    %v1288 = vld [vmem:[#allocation7 + $0x68] sm:$0xff]
    %v1289 = vld [vmem:[#allocation7 + $0x70] sm:$0xff]
    %v1290 = vld [vmem:[#allocation7 + $0x78] sm:$0xff]
    %v1291 = vld [vmem:[#allocation7 + $0x80] sm:$0xff]
    %v1292 = vld [vmem:[#allocation7 + $0x88] sm:$0xff]
    %v1293 = vld [vmem:[#allocation7 + $0x90] sm:$0xff]
    %v1294 = vld [vmem:[#allocation7 + $0x98] sm:$0xff]
    %v1295 = vld [vmem:[#allocation7 + $0xa0] sm:$0xff]
    %v1296 = vld [vmem:[#allocation7 + $0xa8] sm:$0xff]
    %v1297 = vld [vmem:[#allocation7 + $0xb0] sm:$0xff]
    %v1298 = vld [vmem:[#allocation7 + $0xb8] sm:$0xff]
    %v1299 = vld [vmem:[#allocation7 + $0xc0] sm:$0xff]
    %v1300 = vld [vmem:[#allocation7 + $0xc8] sm:$0xff]
    %v1301 = vld [vmem:[#allocation7 + $0xd0] sm:$0xff]
    %v1302 = vld [vmem:[#allocation7 + $0xd8] sm:$0xff]
    %v1303 = vld [vmem:[#allocation7 + $0xe0] sm:$0xff]
    %v1304 = vld [vmem:[#allocation7 + $0xe8] sm:$0xff]
    %v1305 = vld [vmem:[#allocation7 + $0xf0] sm:$0xff]
    %v1306 = vld [vmem:[#allocation7 + $0xf8] sm:$0xff]
    %v1307 = vld [vmem:[#allocation7 + $0x100] sm:$0xff]
    %v1308 = vld [vmem:[#allocation7 + $0x108] sm:$0xff]
    %v1309 = vld [vmem:[#allocation7 + $0x110] sm:$0xff]
    %v1310 = vld [vmem:[#allocation7 + $0x118] sm:$0xff]
    %v1311 = vld [vmem:[#allocation7 + $0x120] sm:$0xff]
    %v1312 = vld [vmem:[#allocation7 + $0x128] sm:$0xff]
    %v1313 = vld [vmem:[#allocation7 + $0x130] sm:$0xff]
    %v1314 = vld [vmem:[#allocation7 + $0x138] sm:$0xff]
    %v1315 = vld [vmem:[#allocation7 + $0x140] sm:$0xff]
    %v1316 = vld [vmem:[#allocation7 + $0x148] sm:$0xff]
    %v1317 = vld [vmem:[#allocation7 + $0x150] sm:$0xff]
    %v1318 = vld [vmem:[#allocation7 + $0x158] sm:$0xff]
    %v1319 = vld [vmem:[#allocation7 + $0x160] sm:$0xff]
    %v1320 = vld [vmem:[#allocation7 + $0x168] sm:$0xff]
    %v1321 = vld [vmem:[#allocation7 + $0x170] sm:$0xff]
    %v1322 = vld [vmem:[#allocation7 + $0x178] sm:$0xff]
    %v1323 = vld [vmem:[#allocation7 + $0x180] sm:$0xff]
    %v1324 = vld [vmem:[#allocation7 + $0x188] sm:$0xff]
    %v1325 = vld [vmem:[#allocation7 + $0x190] sm:$0xff]
    %v1326 = vld [vmem:[#allocation7 + $0x198] sm:$0xff]
    %v1327 = vld [vmem:[#allocation7 + $0x1a0] sm:$0xff]
    %v1328 = vld [vmem:[#allocation7 + $0x1a8] sm:$0xff]
    %v1329 = vld [vmem:[#allocation7 + $0x1b0] sm:$0xff]
    %v1330 = vld [vmem:[#allocation7 + $0x1b8] sm:$0xff]
    %v1331 = vld [vmem:[#allocation7 + $0x1c0] sm:$0xff]
    %v1332 = vld [vmem:[#allocation7 + $0x1c8] sm:$0xff]
    %v1333 = vld [vmem:[#allocation7 + $0x1d0] sm:$0xff]
    %v1334 = vld [vmem:[#allocation7 + $0x1d8] sm:$0xff]
    %v1335 = vld [vmem:[#allocation7 + $0x1e0] sm:$0xff]
    %v1336 = vld [vmem:[#allocation7 + $0x1e8] sm:$0xff]
    %v1337 = vld [vmem:[#allocation7 + $0x1f0] sm:$0xff]
    %v1338 = vld [vmem:[#allocation7 + $0x1f8] sm:$0xff]
    %1339 = vmatprep.subr.mxu0 %v1276
    %1340 = vmatpush1.msra.mxu0 %v1275
    %1341 = vmatprep.subr.mxu0 %v1280
    %1342 = vmatpush1.msra.mxu0 %v1279
    %1343 = vmatprep.subr.mxu0 %v1284
    %1344 = vmatpush1.msra.mxu0 %v1283
    %1345 = vmatprep.subr.mxu0 %v1288
    %1346 = vmatpush1.msra.mxu0 %v1287
    %1347 = vmatprep.subr.mxu0 %v1292
    %1348 = vmatpush1.msra.mxu0 %v1291
    %1349 = vmatprep.subr.mxu0 %v1296
    %1350 = vmatpush1.msra.mxu0 %v1295
    %1351 = vmatprep.subr.mxu0 %v1300
    %1352 = vmatpush1.msra.mxu0 %v1299
    %1353 = vmatprep.subr.mxu0 %v1304
    %1354 = vmatpush1.msra.mxu0 %v1303
    %1355 = vmatprep.subr.mxu0 %v1308
    %1356 = vmatpush1.msra.mxu0 %v1307
    %1357 = vmatprep.subr.mxu0 %v1312
    %1358 = vmatpush1.msra.mxu0 %v1311
    %1359 = vmatprep.subr.mxu0 %v1316
    %1360 = vmatpush1.msra.mxu0 %v1315
    %1361 = vmatprep.subr.mxu0 %v1320
    %1362 = vmatpush1.msra.mxu0 %v1319
    %1363 = vmatprep.subr.mxu0 %v1324
    %1364 = vmatpush1.msra.mxu0 %v1323
    %1365 = vmatprep.subr.mxu0 %v1328
    %1366 = vmatpush1.msra.mxu0 %v1327
    %1367 = vmatprep.subr.mxu0 %v1332
    %1368 = vmatpush1.msra.mxu0 %v1331
    %1369 = vmatprep.subr.mxu0 %v1336
    %1370 = vmatpush1.msra.mxu0 %v1335
    %1371 = vmatprep.subr.mxu0 0.0
    %1372 = vmatpush1.msra.mxu0 0.0
    %1373 = vmatprep.subr.mxu0 0.0
    %1374 = vmatpush1.msra.mxu0 0.0
    %1375 = vmatprep.subr.mxu0 0.0
    %1376 = vmatpush1.msra.mxu0 0.0
    %1377 = vmatprep.subr.mxu0 0.0
    %1378 = vmatpush1.msra.mxu0 0.0
    %1379 = vmatprep.subr.mxu0 0.0
    %1380 = vmatpush1.msra.mxu0 0.0
    %1381 = vmatprep.subr.mxu0 0.0
    %1382 = vmatpush1.msra.mxu0 0.0
    %1383 = vmatprep.subr.mxu0 0.0
    %1384 = vmatpush1.msra.mxu0 0.0
    %1385 = vmatprep.subr.mxu0 0.0
    %1386 = vmatpush1.msra.mxu0 0.0
    %1387 = vmatprep.subr.mxu0 0.0
    %1388 = vmatpush1.msra.mxu0 0.0
    %1389 = vmatprep.subr.mxu0 0.0
    %1390 = vmatpush1.msra.mxu0 0.0
    %1391 = vmatprep.subr.mxu0 0.0
    %1392 = vmatpush1.msra.mxu0 0.0
    %1393 = vmatprep.subr.mxu0 0.0
    %1394 = vmatpush1.msra.mxu0 0.0
    %1395 = vmatprep.subr.mxu0 0.0
    %1396 = vmatpush1.msra.mxu0 0.0
    %1397 = vmatprep.subr.mxu0 0.0
    %1398 = vmatpush1.msra.mxu0 0.0
    %1399 = vmatprep.subr.mxu0 0.0
    %1400 = vmatpush1.msra.mxu0 0.0
    %1401 = vmatprep.subr.mxu0 0.0
    %1402 = vmatpush1.msra.mxu0 0.0
    %1403 = vmatprep.mubr.f32.mxu0 0.0
    %1404 = vmatmul.mubr.f32.gmra.mrb[0].mxu0 %v1274
    %v1405 = vpop.f32.mrb[0].mxu0
    %v1406 = vadd.f32 0.0, %v1405
    %v1407 = vpop.f32.mrb[0].mxu0
    %v1408 = vadd.f32 0.0, %v1407
    %1409 = vdwg.mxu0
    %1410 = vmatprep.subr.mxu0 %v1278
    %1411 = vmatpush1.msra.mxu0 %v1277
    %1412 = vmatprep.subr.mxu0 %v1282
    %1413 = vmatpush1.msra.mxu0 %v1281
    %1414 = vmatprep.subr.mxu0 %v1286
    %1415 = vmatpush1.msra.mxu0 %v1285
    %1416 = vmatprep.subr.mxu0 %v1290
    %1417 = vmatpush1.msra.mxu0 %v1289
    %1418 = vmatprep.subr.mxu0 %v1294
    %1419 = vmatpush1.msra.mxu0 %v1293
    %1420 = vmatprep.subr.mxu0 %v1298
    %1421 = vmatpush1.msra.mxu0 %v1297
    %1422 = vmatprep.subr.mxu0 %v1302
    %1423 = vmatpush1.msra.mxu0 %v1301
    %1424 = vmatprep.subr.mxu0 %v1306
    %1425 = vmatpush1.msra.mxu0 %v1305
    %1426 = vmatprep.subr.mxu0 %v1310
    %1427 = vmatpush1.msra.mxu0 %v1309
    %1428 = vmatprep.subr.mxu0 %v1314
    %1429 = vmatpush1.msra.mxu0 %v1313
    %1430 = vmatprep.subr.mxu0 %v1318
    %1431 = vmatpush1.msra.mxu0 %v1317
    %1432 = vmatprep.subr.mxu0 %v1322
    %1433 = vmatpush1.msra.mxu0 %v1321
    %1434 = vmatprep.subr.mxu0 %v1326
    %1435 = vmatpush1.msra.mxu0 %v1325
    %1436 = vmatprep.subr.mxu0 %v1330
    %1437 = vmatpush1.msra.mxu0 %v1329
    %1438 = vmatprep.subr.mxu0 %v1334
    %1439 = vmatpush1.msra.mxu0 %v1333
    %1440 = vmatprep.subr.mxu0 %v1338
    %1441 = vmatpush1.msra.mxu0 %v1337
    %1442 = vmatprep.subr.mxu0 0.0
    %1443 = vmatpush1.msra.mxu0 0.0
    %1444 = vmatprep.subr.mxu0 0.0
    %1445 = vmatpush1.msra.mxu0 0.0
    %1446 = vmatprep.subr.mxu0 0.0
    %1447 = vmatpush1.msra.mxu0 0.0
    %1448 = vmatprep.subr.mxu0 0.0
    %1449 = vmatpush1.msra.mxu0 0.0
    %1450 = vmatprep.subr.mxu0 0.0
    %1451 = vmatpush1.msra.mxu0 0.0
    %1452 = vmatprep.subr.mxu0 0.0
    %1453 = vmatpush1.msra.mxu0 0.0
    %1454 = vmatprep.subr.mxu0 0.0
    %1455 = vmatpush1.msra.mxu0 0.0
    %1456 = vmatprep.subr.mxu0 0.0
    %1457 = vmatpush1.msra.mxu0 0.0
    %1458 = vmatprep.subr.mxu0 0.0
    %1459 = vmatpush1.msra.mxu0 0.0
    %1460 = vmatprep.subr.mxu0 0.0
    %1461 = vmatpush1.msra.mxu0 0.0
    %1462 = vmatprep.subr.mxu0 0.0
    %1463 = vmatpush1.msra.mxu0 0.0
    %1464 = vmatprep.subr.mxu0 0.0
    %1465 = vmatpush1.msra.mxu0 0.0
    %1466 = vmatprep.subr.mxu0 0.0
    %1467 = vmatpush1.msra.mxu0 0.0
    %1468 = vmatprep.subr.mxu0 0.0
    %1469 = vmatpush1.msra.mxu0 0.0
    %1470 = vmatprep.subr.mxu0 0.0
    %1471 = vmatpush1.msra.mxu0 0.0
    %1472 = vmatprep.subr.mxu0 0.0
    %1473 = vmatpush1.msra.mxu0 0.0
    %1474 = vmatprep.mubr.f32.mxu0 0.0
    %1475 = vmatmul.mubr.f32.gmra.mrb[0].mxu0 %v1274
    %v1476 = vpop.f32.mrb[0].mxu0
    %v1477 = vadd.f32 0.0, %v1476
    %v1478 = vpop.f32.mrb[0].mxu0
    %v1479 = vadd.f32 0.0, %v1478
    %1480 = vdwg.mxu0
    %v1481 = vadd.f32 %v1270, %v1406
    %v1482 = vadd.f32 %v1271, %v1408
    %v1483 = vadd.f32 %v1272, %v1477
    %v1484 = vadd.f32 %v1273, %v1479
    %v1485 = vxor.u32 %v1481, 2147483648
    %v1486 = vxor.u32 %v1482, 2147483648
    %v1487 = vxor.u32 %v1483, 2147483648
    %v1488 = vmul.f32 %v1485, 1.442695
    %v1489 = vpow.pop %v1488
    %v1490 = vmul.f32 %v1486, 1.442695
    %v1491 = vpow.pop %v1490
    %v1492 = vmul.f32 %v1487, 1.442695
    %v1493 = vpow.pop %v1492
    %v1494 = vadd.f32 %v1489, 1.0
    %v1495 = vadd.f32 %v1491, 1.0
    %v1496 = vadd.f32 %v1493, 1.0
    %v1497 = vrcp.pop %v1494
    %v1498 = vmul.f32 1.0, %v1497
    %v1499 = vrcp.pop %v1495
    %v1500 = vmul.f32 1.0, %v1499
    %v1501 = vrcp.pop %v1496
    %v1502 = vmul.f32 1.0, %v1501
    %v1503 = vtanh.pop %v1484
    %v1504 = vld [vmem:[#allocation3] sm:$0xff]
    %v1505 = vmul.f32 %v1500, %v1504
    %v1506 = vmul.f32 %v1498, %v1503
    %v1507 = vadd.f32 %v1505, %v1506
    %v1508 = vtanh.pop %v1507
    %v1509 = vmul.f32 %v1502, %v1508
    %1510 = vst [vmem:[#allocation3] sm:$0xff] %v1507
    %1511 = vst [vmem:[#allocation2] sm:$0xff] %v1509
    %s1512 = scalar_lea.vmem [#allocation9], 40
    %1513 = vst [vmem:[%s1512] sm:$0xff] %v1509
    %s1514 = scalar_lea.vmem [#allocation4], 192
    %v1515 = vld [vmem:[%s1514] sm:$0xff]
    %v1516 = vld [vmem:[%s1514 + $0x8] sm:$0xff]
    %v1517 = vld [vmem:[%s1514 + $0x10] sm:$0xff]
    %v1518 = vld [vmem:[%s1514 + $0x18] sm:$0xff]
    %v1519 = vld [vmem:[#allocation2] sm:$0xff]
    %v1520 = vld [vmem:[#allocation7] sm:$0xff]
    %v1521 = vld [vmem:[#allocation7 + $0x8] sm:$0xff]
    %v1522 = vld [vmem:[#allocation7 + $0x10] sm:$0xff]
    %v1523 = vld [vmem:[#allocation7 + $0x18] sm:$0xff]
    %v1524 = vld [vmem:[#allocation7 + $0x20] sm:$0xff]
    %v1525 = vld [vmem:[#allocation7 + $0x28] sm:$0xff]
    %v1526 = vld [vmem:[#allocation7 + $0x30] sm:$0xff]
    %v1527 = vld [vmem:[#allocation7 + $0x38] sm:$0xff]
    %v1528 = vld [vmem:[#allocation7 + $0x40] sm:$0xff]
    %v1529 = vld [vmem:[#allocation7 + $0x48] sm:$0xff]
    %v1530 = vld [vmem:[#allocation7 + $0x50] sm:$0xff]
    %v1531 = vld [vmem:[#allocation7 + $0x58] sm:$0xff]
    %v1532 = vld [vmem:[#allocation7 + $0x60] sm:$0xff]
    %v1533 = vld [vmem:[#allocation7 + $0x68] sm:$0xff]
    %v1534 = vld [vmem:[#allocation7 + $0x70] sm:$0xff]
    %v1535 = vld [vmem:[#allocation7 + $0x78] sm:$0xff]
    %v1536 = vld [vmem:[#allocation7 + $0x80] sm:$0xff]
    %v1537 = vld [vmem:[#allocation7 + $0x88] sm:$0xff]
    %v1538 = vld [vmem:[#allocation7 + $0x90] sm:$0xff]
    %v1539 = vld [vmem:[#allocation7 + $0x98] sm:$0xff]
    %v1540 = vld [vmem:[#allocation7 + $0xa0] sm:$0xff]
    %v1541 = vld [vmem:[#allocation7 + $0xa8] sm:$0xff]
    %v1542 = vld [vmem:[#allocation7 + $0xb0] sm:$0xff]
    %v1543 = vld [vmem:[#allocation7 + $0xb8] sm:$0xff]
    %v1544 = vld [vmem:[#allocation7 + $0xc0] sm:$0xff]
    %v1545 = vld [vmem:[#allocation7 + $0xc8] sm:$0xff]
    %v1546 = vld [vmem:[#allocation7 + $0xd0] sm:$0xff]
    %v1547 = vld [vmem:[#allocation7 + $0xd8] sm:$0xff]
    %v1548 = vld [vmem:[#allocation7 + $0xe0] sm:$0xff]
    %v1549 = vld [vmem:[#allocation7 + $0xe8] sm:$0xff]
    %v1550 = vld [vmem:[#allocation7 + $0xf0] sm:$0xff]
    %v1551 = vld [vmem:[#allocation7 + $0xf8] sm:$0xff]
    %v1552 = vld [vmem:[#allocation7 + $0x100] sm:$0xff]
    %v1553 = vld [vmem:[#allocation7 + $0x108] sm:$0xff]
    %v1554 = vld [vmem:[#allocation7 + $0x110] sm:$0xff]
    %v1555 = vld [vmem:[#allocation7 + $0x118] sm:$0xff]
    %v1556 = vld [vmem:[#allocation7 + $0x120] sm:$0xff]
    %v1557 = vld [vmem:[#allocation7 + $0x128] sm:$0xff]
    %v1558 = vld [vmem:[#allocation7 + $0x130] sm:$0xff]
    %v1559 = vld [vmem:[#allocation7 + $0x138] sm:$0xff]
    %v1560 = vld [vmem:[#allocation7 + $0x140] sm:$0xff]
    %v1561 = vld [vmem:[#allocation7 + $0x148] sm:$0xff]
    %v1562 = vld [vmem:[#allocation7 + $0x150] sm:$0xff]
    %v1563 = vld [vmem:[#allocation7 + $0x158] sm:$0xff]
    %v1564 = vld [vmem:[#allocation7 + $0x160] sm:$0xff]
    %v1565 = vld [vmem:[#allocation7 + $0x168] sm:$0xff]
    %v1566 = vld [vmem:[#allocation7 + $0x170] sm:$0xff]
    %v1567 = vld [vmem:[#allocation7 + $0x178] sm:$0xff]
    %v1568 = vld [vmem:[#allocation7 + $0x180] sm:$0xff]
    %v1569 = vld [vmem:[#allocation7 + $0x188] sm:$0xff]
    %v1570 = vld [vmem:[#allocation7 + $0x190] sm:$0xff]
    %v1571 = vld [vmem:[#allocation7 + $0x198] sm:$0xff]
    %v1572 = vld [vmem:[#allocation7 + $0x1a0] sm:$0xff]
    %v1573 = vld [vmem:[#allocation7 + $0x1a8] sm:$0xff]
    %v1574 = vld [vmem:[#allocation7 + $0x1b0] sm:$0xff]
    %v1575 = vld [vmem:[#allocation7 + $0x1b8] sm:$0xff]
    %v1576 = vld [vmem:[#allocation7 + $0x1c0] sm:$0xff]
    %v1577 = vld [vmem:[#allocation7 + $0x1c8] sm:$0xff]
    %v1578 = vld [vmem:[#allocation7 + $0x1d0] sm:$0xff]
    %v1579 = vld [vmem:[#allocation7 + $0x1d8] sm:$0xff]
    %v1580 = vld [vmem:[#allocation7 + $0x1e0] sm:$0xff]
    %v1581 = vld [vmem:[#allocation7 + $0x1e8] sm:$0xff]
    %v1582 = vld [vmem:[#allocation7 + $0x1f0] sm:$0xff]
    %v1583 = vld [vmem:[#allocation7 + $0x1f8] sm:$0xff]
    %1584 = vmatprep.subr.mxu0 %v1521
    %1585 = vmatpush1.msra.mxu0 %v1520
    %1586 = vmatprep.subr.mxu0 %v1525
    %1587 = vmatpush1.msra.mxu0 %v1524
    %1588 = vmatprep.subr.mxu0 %v1529
    %1589 = vmatpush1.msra.mxu0 %v1528
    %1590 = vmatprep.subr.mxu0 %v1533
    %1591 = vmatpush1.msra.mxu0 %v1532
    %1592 = vmatprep.subr.mxu0 %v1537
    %1593 = vmatpush1.msra.mxu0 %v1536
    %1594 = vmatprep.subr.mxu0 %v1541
    %1595 = vmatpush1.msra.mxu0 %v1540
    %1596 = vmatprep.subr.mxu0 %v1545
    %1597 = vmatpush1.msra.mxu0 %v1544
    %1598 = vmatprep.subr.mxu0 %v1549
    %1599 = vmatpush1.msra.mxu0 %v1548
    %1600 = vmatprep.subr.mxu0 %v1553
    %1601 = vmatpush1.msra.mxu0 %v1552
    %1602 = vmatprep.subr.mxu0 %v1557
    %1603 = vmatpush1.msra.mxu0 %v1556
    %1604 = vmatprep.subr.mxu0 %v1561
    %1605 = vmatpush1.msra.mxu0 %v1560
    %1606 = vmatprep.subr.mxu0 %v1565
    %1607 = vmatpush1.msra.mxu0 %v1564
    %1608 = vmatprep.subr.mxu0 %v1569
    %1609 = vmatpush1.msra.mxu0 %v1568
    %1610 = vmatprep.subr.mxu0 %v1573
    %1611 = vmatpush1.msra.mxu0 %v1572
    %1612 = vmatprep.subr.mxu0 %v1577
    %1613 = vmatpush1.msra.mxu0 %v1576
    %1614 = vmatprep.subr.mxu0 %v1581
    %1615 = vmatpush1.msra.mxu0 %v1580
    %1616 = vmatprep.subr.mxu0 0.0
    %1617 = vmatpush1.msra.mxu0 0.0
    %1618 = vmatprep.subr.mxu0 0.0
    %1619 = vmatpush1.msra.mxu0 0.0
    %1620 = vmatprep.subr.mxu0 0.0
    %1621 = vmatpush1.msra.mxu0 0.0
    %1622 = vmatprep.subr.mxu0 0.0
    %1623 = vmatpush1.msra.mxu0 0.0
    %1624 = vmatprep.subr.mxu0 0.0
    %1625 = vmatpush1.msra.mxu0 0.0
    %1626 = vmatprep.subr.mxu0 0.0
    %1627 = vmatpush1.msra.mxu0 0.0
    %1628 = vmatprep.subr.mxu0 0.0
    %1629 = vmatpush1.msra.mxu0 0.0
    %1630 = vmatprep.subr.mxu0 0.0
    %1631 = vmatpush1.msra.mxu0 0.0
    %1632 = vmatprep.subr.mxu0 0.0
    %1633 = vmatpush1.msra.mxu0 0.0
    %1634 = vmatprep.subr.mxu0 0.0
    %1635 = vmatpush1.msra.mxu0 0.0
    %1636 = vmatprep.subr.mxu0 0.0
    %1637 = vmatpush1.msra.mxu0 0.0
    %1638 = vmatprep.subr.mxu0 0.0
    %1639 = vmatpush1.msra.mxu0 0.0
    %1640 = vmatprep.subr.mxu0 0.0
    %1641 = vmatpush1.msra.mxu0 0.0
    %1642 = vmatprep.subr.mxu0 0.0
    %1643 = vmatpush1.msra.mxu0 0.0
    %1644 = vmatprep.subr.mxu0 0.0
    %1645 = vmatpush1.msra.mxu0 0.0
    %1646 = vmatprep.subr.mxu0 0.0
    %1647 = vmatpush1.msra.mxu0 0.0
    %1648 = vmatprep.mubr.f32.mxu0 0.0
    %1649 = vmatmul.mubr.f32.gmra.mrb[0].mxu0 %v1519
    %v1650 = vpop.f32.mrb[0].mxu0
    %v1651 = vadd.f32 0.0, %v1650
    %v1652 = vpop.f32.mrb[0].mxu0
    %v1653 = vadd.f32 0.0, %v1652
    %1654 = vdwg.mxu0
    %1655 = vmatprep.subr.mxu0 %v1523
    %1656 = vmatpush1.msra.mxu0 %v1522
    %1657 = vmatprep.subr.mxu0 %v1527
    %1658 = vmatpush1.msra.mxu0 %v1526
    %1659 = vmatprep.subr.mxu0 %v1531
    %1660 = vmatpush1.msra.mxu0 %v1530
    %1661 = vmatprep.subr.mxu0 %v1535
    %1662 = vmatpush1.msra.mxu0 %v1534
    %1663 = vmatprep.subr.mxu0 %v1539
    %1664 = vmatpush1.msra.mxu0 %v1538
    %1665 = vmatprep.subr.mxu0 %v1543
    %1666 = vmatpush1.msra.mxu0 %v1542
    %1667 = vmatprep.subr.mxu0 %v1547
    %1668 = vmatpush1.msra.mxu0 %v1546
    %1669 = vmatprep.subr.mxu0 %v1551
    %1670 = vmatpush1.msra.mxu0 %v1550
    %1671 = vmatprep.subr.mxu0 %v1555
    %1672 = vmatpush1.msra.mxu0 %v1554
    %1673 = vmatprep.subr.mxu0 %v1559
    %1674 = vmatpush1.msra.mxu0 %v1558
    %1675 = vmatprep.subr.mxu0 %v1563
    %1676 = vmatpush1.msra.mxu0 %v1562
    %1677 = vmatprep.subr.mxu0 %v1567
    %1678 = vmatpush1.msra.mxu0 %v1566
    %1679 = vmatprep.subr.mxu0 %v1571
    %1680 = vmatpush1.msra.mxu0 %v1570
    %1681 = vmatprep.subr.mxu0 %v1575
    %1682 = vmatpush1.msra.mxu0 %v1574
    %1683 = vmatprep.subr.mxu0 %v1579
    %1684 = vmatpush1.msra.mxu0 %v1578
    %1685 = vmatprep.subr.mxu0 %v1583
    %1686 = vmatpush1.msra.mxu0 %v1582
    %1687 = vmatprep.subr.mxu0 0.0
    %1688 = vmatpush1.msra.mxu0 0.0
    %1689 = vmatprep.subr.mxu0 0.0
    %1690 = vmatpush1.msra.mxu0 0.0
    %1691 = vmatprep.subr.mxu0 0.0
    %1692 = vmatpush1.msra.mxu0 0.0
    %1693 = vmatprep.subr.mxu0 0.0
    %1694 = vmatpush1.msra.mxu0 0.0
    %1695 = vmatprep.subr.mxu0 0.0
    %1696 = vmatpush1.msra.mxu0 0.0
    %1697 = vmatprep.subr.mxu0 0.0
    %1698 = vmatpush1.msra.mxu0 0.0
    %1699 = vmatprep.subr.mxu0 0.0
    %1700 = vmatpush1.msra.mxu0 0.0
    %1701 = vmatprep.subr.mxu0 0.0
    %1702 = vmatpush1.msra.mxu0 0.0
    %1703 = vmatprep.subr.mxu0 0.0
    %1704 = vmatpush1.msra.mxu0 0.0
    %1705 = vmatprep.subr.mxu0 0.0
    %1706 = vmatpush1.msra.mxu0 0.0
    %1707 = vmatprep.subr.mxu0 0.0
    %1708 = vmatpush1.msra.mxu0 0.0
    %1709 = vmatprep.subr.mxu0 0.0
    %1710 = vmatpush1.msra.mxu0 0.0
    %1711 = vmatprep.subr.mxu0 0.0
    %1712 = vmatpush1.msra.mxu0 0.0
    %1713 = vmatprep.subr.mxu0 0.0
    %1714 = vmatpush1.msra.mxu0 0.0
    %1715 = vmatprep.subr.mxu0 0.0
    %1716 = vmatpush1.msra.mxu0 0.0
    %1717 = vmatprep.subr.mxu0 0.0
    %1718 = vmatpush1.msra.mxu0 0.0
    %1719 = vmatprep.mubr.f32.mxu0 0.0
    %1720 = vmatmul.mubr.f32.gmra.mrb[0].mxu0 %v1519
    %v1721 = vpop.f32.mrb[0].mxu0
    %v1722 = vadd.f32 0.0, %v1721
    %v1723 = vpop.f32.mrb[0].mxu0
    %v1724 = vadd.f32 0.0, %v1723
    %1725 = vdwg.mxu0
    %v1726 = vadd.f32 %v1515, %v1651
    %v1727 = vadd.f32 %v1516, %v1653
    %v1728 = vadd.f32 %v1517, %v1722
    %v1729 = vadd.f32 %v1518, %v1724
    %v1730 = vxor.u32 %v1726, 2147483648
    %v1731 = vxor.u32 %v1727, 2147483648
    %v1732 = vxor.u32 %v1728, 2147483648
    %v1733 = vmul.f32 %v1730, 1.442695
    %v1734 = vpow.pop %v1733
    %v1735 = vmul.f32 %v1731, 1.442695
    %v1736 = vpow.pop %v1735
    %v1737 = vmul.f32 %v1732, 1.442695
    %v1738 = vpow.pop %v1737
    %v1739 = vadd.f32 %v1734, 1.0
    %v1740 = vadd.f32 %v1736, 1.0
    %v1741 = vadd.f32 %v1738, 1.0
    %v1742 = vrcp.pop %v1739
    %v1743 = vmul.f32 1.0, %v1742
    %v1744 = vrcp.pop %v1740
    %v1745 = vmul.f32 1.0, %v1744
    %v1746 = vrcp.pop %v1741
    %v1747 = vmul.f32 1.0, %v1746
    %v1748 = vtanh.pop %v1729
    %v1749 = vld [vmem:[#allocation3] sm:$0xff]
    %v1750 = vmul.f32 %v1745, %v1749
    %v1751 = vmul.f32 %v1743, %v1748
    %v1752 = vadd.f32 %v1750, %v1751
    %v1753 = vtanh.pop %v1752
    %v1754 = vmul.f32 %v1747, %v1753
    %1755 = vst [vmem:[#allocation3] sm:$0xff] %v1752
    %1756 = vst [vmem:[#allocation2] sm:$0xff] %v1754
    %s1757 = scalar_lea.vmem [#allocation9], 48
    %1758 = vst [vmem:[%s1757] sm:$0xff] %v1754
    %s1759 = scalar_lea.vmem [#allocation4], 224
    %v1760 = vld [vmem:[%s1759] sm:$0xff]
    %v1761 = vld [vmem:[%s1759 + $0x8] sm:$0xff]
    %v1762 = vld [vmem:[%s1759 + $0x10] sm:$0xff]
    %v1763 = vld [vmem:[%s1759 + $0x18] sm:$0xff]
    %v1764 = vld [vmem:[#allocation2] sm:$0xff]
    %v1765 = vld [vmem:[#allocation7] sm:$0xff]
    %v1766 = vld [vmem:[#allocation7 + $0x8] sm:$0xff]
    %v1767 = vld [vmem:[#allocation7 + $0x10] sm:$0xff]
    %v1768 = vld [vmem:[#allocation7 + $0x18] sm:$0xff]
    %v1769 = vld [vmem:[#allocation7 + $0x20] sm:$0xff]
    %v1770 = vld [vmem:[#allocation7 + $0x28] sm:$0xff]
    %v1771 = vld [vmem:[#allocation7 + $0x30] sm:$0xff]
    %v1772 = vld [vmem:[#allocation7 + $0x38] sm:$0xff]
    %v1773 = vld [vmem:[#allocation7 + $0x40] sm:$0xff]
    %v1774 = vld [vmem:[#allocation7 + $0x48] sm:$0xff]
    %v1775 = vld [vmem:[#allocation7 + $0x50] sm:$0xff]
    %v1776 = vld [vmem:[#allocation7 + $0x58] sm:$0xff]
    %v1777 = vld [vmem:[#allocation7 + $0x60] sm:$0xff]
    %v1778 = vld [vmem:[#allocation7 + $0x68] sm:$0xff]
    %v1779 = vld [vmem:[#allocation7 + $0x70] sm:$0xff]
    %v1780 = vld [vmem:[#allocation7 + $0x78] sm:$0xff]
    %v1781 = vld [vmem:[#allocation7 + $0x80] sm:$0xff]
    %v1782 = vld [vmem:[#allocation7 + $0x88] sm:$0xff]
    %v1783 = vld [vmem:[#allocation7 + $0x90] sm:$0xff]
    %v1784 = vld [vmem:[#allocation7 + $0x98] sm:$0xff]
    %v1785 = vld [vmem:[#allocation7 + $0xa0] sm:$0xff]
    %v1786 = vld [vmem:[#allocation7 + $0xa8] sm:$0xff]
    %v1787 = vld [vmem:[#allocation7 + $0xb0] sm:$0xff]
    %v1788 = vld [vmem:[#allocation7 + $0xb8] sm:$0xff]
    %v1789 = vld [vmem:[#allocation7 + $0xc0] sm:$0xff]
    %v1790 = vld [vmem:[#allocation7 + $0xc8] sm:$0xff]
    %v1791 = vld [vmem:[#allocation7 + $0xd0] sm:$0xff]
    %v1792 = vld [vmem:[#allocation7 + $0xd8] sm:$0xff]
    %v1793 = vld [vmem:[#allocation7 + $0xe0] sm:$0xff]
    %v1794 = vld [vmem:[#allocation7 + $0xe8] sm:$0xff]
    %v1795 = vld [vmem:[#allocation7 + $0xf0] sm:$0xff]
    %v1796 = vld [vmem:[#allocation7 + $0xf8] sm:$0xff]
    %v1797 = vld [vmem:[#allocation7 + $0x100] sm:$0xff]
    %v1798 = vld [vmem:[#allocation7 + $0x108] sm:$0xff]
    %v1799 = vld [vmem:[#allocation7 + $0x110] sm:$0xff]
    %v1800 = vld [vmem:[#allocation7 + $0x118] sm:$0xff]
    %v1801 = vld [vmem:[#allocation7 + $0x120] sm:$0xff]
    %v1802 = vld [vmem:[#allocation7 + $0x128] sm:$0xff]
    %v1803 = vld [vmem:[#allocation7 + $0x130] sm:$0xff]
    %v1804 = vld [vmem:[#allocation7 + $0x138] sm:$0xff]
    %v1805 = vld [vmem:[#allocation7 + $0x140] sm:$0xff]
    %v1806 = vld [vmem:[#allocation7 + $0x148] sm:$0xff]
    %v1807 = vld [vmem:[#allocation7 + $0x150] sm:$0xff]
    %v1808 = vld [vmem:[#allocation7 + $0x158] sm:$0xff]
    %v1809 = vld [vmem:[#allocation7 + $0x160] sm:$0xff]
    %v1810 = vld [vmem:[#allocation7 + $0x168] sm:$0xff]
    %v1811 = vld [vmem:[#allocation7 + $0x170] sm:$0xff]
    %v1812 = vld [vmem:[#allocation7 + $0x178] sm:$0xff]
    %v1813 = vld [vmem:[#allocation7 + $0x180] sm:$0xff]
    %v1814 = vld [vmem:[#allocation7 + $0x188] sm:$0xff]
    %v1815 = vld [vmem:[#allocation7 + $0x190] sm:$0xff]
    %v1816 = vld [vmem:[#allocation7 + $0x198] sm:$0xff]
    %v1817 = vld [vmem:[#allocation7 + $0x1a0] sm:$0xff]
    %v1818 = vld [vmem:[#allocation7 + $0x1a8] sm:$0xff]
    %v1819 = vld [vmem:[#allocation7 + $0x1b0] sm:$0xff]
    %v1820 = vld [vmem:[#allocation7 + $0x1b8] sm:$0xff]
    %v1821 = vld [vmem:[#allocation7 + $0x1c0] sm:$0xff]
    %v1822 = vld [vmem:[#allocation7 + $0x1c8] sm:$0xff]
    %v1823 = vld [vmem:[#allocation7 + $0x1d0] sm:$0xff]
    %v1824 = vld [vmem:[#allocation7 + $0x1d8] sm:$0xff]
    %v1825 = vld [vmem:[#allocation7 + $0x1e0] sm:$0xff]
    %v1826 = vld [vmem:[#allocation7 + $0x1e8] sm:$0xff]
    %v1827 = vld [vmem:[#allocation7 + $0x1f0] sm:$0xff]
    %v1828 = vld [vmem:[#allocation7 + $0x1f8] sm:$0xff]
    %1829 = vmatprep.subr.mxu0 %v1766
    %1830 = vmatpush1.msra.mxu0 %v1765
    %1831 = vmatprep.subr.mxu0 %v1770
    %1832 = vmatpush1.msra.mxu0 %v1769
    %1833 = vmatprep.subr.mxu0 %v1774
    %1834 = vmatpush1.msra.mxu0 %v1773
    %1835 = vmatprep.subr.mxu0 %v1778
    %1836 = vmatpush1.msra.mxu0 %v1777
    %1837 = vmatprep.subr.mxu0 %v1782
    %1838 = vmatpush1.msra.mxu0 %v1781
    %1839 = vmatprep.subr.mxu0 %v1786
    %1840 = vmatpush1.msra.mxu0 %v1785
    %1841 = vmatprep.subr.mxu0 %v1790
    %1842 = vmatpush1.msra.mxu0 %v1789
    %1843 = vmatprep.subr.mxu0 %v1794
    %1844 = vmatpush1.msra.mxu0 %v1793
    %1845 = vmatprep.subr.mxu0 %v1798
    %1846 = vmatpush1.msra.mxu0 %v1797
    %1847 = vmatprep.subr.mxu0 %v1802
    %1848 = vmatpush1.msra.mxu0 %v1801
    %1849 = vmatprep.subr.mxu0 %v1806
    %1850 = vmatpush1.msra.mxu0 %v1805
    %1851 = vmatprep.subr.mxu0 %v1810
    %1852 = vmatpush1.msra.mxu0 %v1809
    %1853 = vmatprep.subr.mxu0 %v1814
    %1854 = vmatpush1.msra.mxu0 %v1813
    %1855 = vmatprep.subr.mxu0 %v1818
    %1856 = vmatpush1.msra.mxu0 %v1817
    %1857 = vmatprep.subr.mxu0 %v1822
    %1858 = vmatpush1.msra.mxu0 %v1821
    %1859 = vmatprep.subr.mxu0 %v1826
    %1860 = vmatpush1.msra.mxu0 %v1825
    %1861 = vmatprep.subr.mxu0 0.0
    %1862 = vmatpush1.msra.mxu0 0.0
    %1863 = vmatprep.subr.mxu0 0.0
    %1864 = vmatpush1.msra.mxu0 0.0
    %1865 = vmatprep.subr.mxu0 0.0
    %1866 = vmatpush1.msra.mxu0 0.0
    %1867 = vmatprep.subr.mxu0 0.0
    %1868 = vmatpush1.msra.mxu0 0.0
    %1869 = vmatprep.subr.mxu0 0.0
    %1870 = vmatpush1.msra.mxu0 0.0
    %1871 = vmatprep.subr.mxu0 0.0
    %1872 = vmatpush1.msra.mxu0 0.0
    %1873 = vmatprep.subr.mxu0 0.0
    %1874 = vmatpush1.msra.mxu0 0.0
    %1875 = vmatprep.subr.mxu0 0.0
    %1876 = vmatpush1.msra.mxu0 0.0
    %1877 = vmatprep.subr.mxu0 0.0
    %1878 = vmatpush1.msra.mxu0 0.0
    %1879 = vmatprep.subr.mxu0 0.0
    %1880 = vmatpush1.msra.mxu0 0.0
    %1881 = vmatprep.subr.mxu0 0.0
    %1882 = vmatpush1.msra.mxu0 0.0
    %1883 = vmatprep.subr.mxu0 0.0
    %1884 = vmatpush1.msra.mxu0 0.0
    %1885 = vmatprep.subr.mxu0 0.0
    %1886 = vmatpush1.msra.mxu0 0.0
    %1887 = vmatprep.subr.mxu0 0.0
    %1888 = vmatpush1.msra.mxu0 0.0
    %1889 = vmatprep.subr.mxu0 0.0
    %1890 = vmatpush1.msra.mxu0 0.0
    %1891 = vmatprep.subr.mxu0 0.0
    %1892 = vmatpush1.msra.mxu0 0.0
    %1893 = vmatprep.mubr.f32.mxu0 0.0
    %1894 = vmatmul.mubr.f32.gmra.mrb[0].mxu0 %v1764
    %v1895 = vpop.f32.mrb[0].mxu0
    %v1896 = vadd.f32 0.0, %v1895
    %v1897 = vpop.f32.mrb[0].mxu0
    %v1898 = vadd.f32 0.0, %v1897
    %1899 = vdwg.mxu0
    %1900 = vmatprep.subr.mxu0 %v1768
    %1901 = vmatpush1.msra.mxu0 %v1767
    %1902 = vmatprep.subr.mxu0 %v1772
    %1903 = vmatpush1.msra.mxu0 %v1771
    %1904 = vmatprep.subr.mxu0 %v1776
    %1905 = vmatpush1.msra.mxu0 %v1775
    %1906 = vmatprep.subr.mxu0 %v1780
    %1907 = vmatpush1.msra.mxu0 %v1779
    %1908 = vmatprep.subr.mxu0 %v1784
    %1909 = vmatpush1.msra.mxu0 %v1783
    %1910 = vmatprep.subr.mxu0 %v1788
    %1911 = vmatpush1.msra.mxu0 %v1787
    %1912 = vmatprep.subr.mxu0 %v1792
    %1913 = vmatpush1.msra.mxu0 %v1791
    %1914 = vmatprep.subr.mxu0 %v1796
    %1915 = vmatpush1.msra.mxu0 %v1795
    %1916 = vmatprep.subr.mxu0 %v1800
    %1917 = vmatpush1.msra.mxu0 %v1799
    %1918 = vmatprep.subr.mxu0 %v1804
    %1919 = vmatpush1.msra.mxu0 %v1803
    %1920 = vmatprep.subr.mxu0 %v1808
    %1921 = vmatpush1.msra.mxu0 %v1807
    %1922 = vmatprep.subr.mxu0 %v1812
    %1923 = vmatpush1.msra.mxu0 %v1811
    %1924 = vmatprep.subr.mxu0 %v1816
    %1925 = vmatpush1.msra.mxu0 %v1815
    %1926 = vmatprep.subr.mxu0 %v1820
    %1927 = vmatpush1.msra.mxu0 %v1819
    %1928 = vmatprep.subr.mxu0 %v1824
    %1929 = vmatpush1.msra.mxu0 %v1823
    %1930 = vmatprep.subr.mxu0 %v1828
    %1931 = vmatpush1.msra.mxu0 %v1827
    %1932 = vmatprep.subr.mxu0 0.0
    %1933 = vmatpush1.msra.mxu0 0.0
    %1934 = vmatprep.subr.mxu0 0.0
    %1935 = vmatpush1.msra.mxu0 0.0
    %1936 = vmatprep.subr.mxu0 0.0
    %1937 = vmatpush1.msra.mxu0 0.0
    %1938 = vmatprep.subr.mxu0 0.0
    %1939 = vmatpush1.msra.mxu0 0.0
    %1940 = vmatprep.subr.mxu0 0.0
    %1941 = vmatpush1.msra.mxu0 0.0
    %1942 = vmatprep.subr.mxu0 0.0
    %1943 = vmatpush1.msra.mxu0 0.0
    %1944 = vmatprep.subr.mxu0 0.0
    %1945 = vmatpush1.msra.mxu0 0.0
    %1946 = vmatprep.subr.mxu0 0.0
    %1947 = vmatpush1.msra.mxu0 0.0
    %1948 = vmatprep.subr.mxu0 0.0
    %1949 = vmatpush1.msra.mxu0 0.0
    %1950 = vmatprep.subr.mxu0 0.0
    %1951 = vmatpush1.msra.mxu0 0.0
    %1952 = vmatprep.subr.mxu0 0.0
    %1953 = vmatpush1.msra.mxu0 0.0
    %1954 = vmatprep.subr.mxu0 0.0
    %1955 = vmatpush1.msra.mxu0 0.0
    %1956 = vmatprep.subr.mxu0 0.0
    %1957 = vmatpush1.msra.mxu0 0.0
    %1958 = vmatprep.subr.mxu0 0.0
    %1959 = vmatpush1.msra.mxu0 0.0
    %1960 = vmatprep.subr.mxu0 0.0
    %1961 = vmatpush1.msra.mxu0 0.0
    %1962 = vmatprep.subr.mxu0 0.0
    %1963 = vmatpush1.msra.mxu0 0.0
    %1964 = vmatprep.mubr.f32.mxu0 0.0
    %1965 = vmatmul.mubr.f32.gmra.mrb[0].mxu0 %v1764
    %v1966 = vpop.f32.mrb[0].mxu0
    %v1967 = vadd.f32 0.0, %v1966
    %v1968 = vpop.f32.mrb[0].mxu0
    %v1969 = vadd.f32 0.0, %v1968
    %1970 = vdwg.mxu0
    %v1971 = vadd.f32 %v1760, %v1896
    %v1972 = vadd.f32 %v1761, %v1898
    %v1973 = vadd.f32 %v1762, %v1967
    %v1974 = vadd.f32 %v1763, %v1969
    %v1975 = vxor.u32 %v1971, 2147483648
    %v1976 = vxor.u32 %v1972, 2147483648
    %v1977 = vxor.u32 %v1973, 2147483648
    %v1978 = vmul.f32 %v1975, 1.442695
    %v1979 = vpow.pop %v1978
    %v1980 = vmul.f32 %v1976, 1.442695
    %v1981 = vpow.pop %v1980
    %v1982 = vmul.f32 %v1977, 1.442695
    %v1983 = vpow.pop %v1982
    %v1984 = vadd.f32 %v1979, 1.0
    %v1985 = vadd.f32 %v1981, 1.0
    %v1986 = vadd.f32 %v1983, 1.0
    %v1987 = vrcp.pop %v1984
    %v1988 = vmul.f32 1.0, %v1987
    %v1989 = vrcp.pop %v1985
    %v1990 = vmul.f32 1.0, %v1989
    %v1991 = vrcp.pop %v1986
    %v1992 = vmul.f32 1.0, %v1991
    %v1993 = vtanh.pop %v1974
    %v1994 = vld [vmem:[#allocation3] sm:$0xff]
    %v1995 = vmul.f32 %v1990, %v1994
    %v1996 = vmul.f32 %v1988, %v1993
    %v1997 = vadd.f32 %v1995, %v1996
    %v1998 = vtanh.pop %v1997
    %v1999 = vmul.f32 %v1992, %v1998
    %2000 = vst [vmem:[#allocation3] sm:$0xff] %v1997
    %2001 = vst [vmem:[#allocation2] sm:$0xff] %v1999
    %s2002 = scalar_lea.vmem [#allocation9], 56
    %2003 = vst [vmem:[%s2002] sm:$0xff] %v1999
    // Predicated region
    $region22: #{tpu_custom_call.1} parent=1 // pred_check
      _
    $region23: #{tpu_custom_call.1} parent=1 // pred_check_branch
      %2005 = sbr.rel (0) target = $region25
    $region24: #{tpu_custom_call.1} parent=1 // pred_region
      %s2007 = ssub.s32 1024, 1024
      %2008 = vsyncadd [#allocation6], %s2007
      %s2009 = sshll.u32 [#allocation9], 4
      %s2010 = int_to_ptr.vmem [resolvable:$true] %s2009
      %2015 = dma.vmem_to_hbm [thread:$0]  %s2010, 1024, %s2, [#allocation6], 128, 128, 8
    $region25: #{tpu_custom_call.1} parent=1 // pred_fallthru
      _
    // Predicated region
    $region26: #{tpu_custom_call.1} parent=1 // pred_check
      _
    $region27: #{tpu_custom_call.1} parent=1 // pred_check_branch
      %2017 = sbr.rel (0) target = $region29
    $region28: #{tpu_custom_call.1} parent=1 // pred_region
      %2018 = dma.done [#allocation6], 1024
    $region29: #{tpu_custom_call.1} parent=1 // pred_fallthru
      _
    %2019 = vsyncpa [#allocation5], 1
    %2020 = vsyncpa [#allocation8], 1
    %2021 = vsyncpa [#allocation6], 1

</llo_original>
